<compile_context>
chip_gen: v6e
topology: v6e:2x2x1
jax: 0.10.0
libtpu: 0.0.40
codegen_flags: <defaults>
</compile_context>

<pallas_src>
import functools

import jax
import jax.numpy as jnp
from jax.experimental import pallas as pl
from jax.experimental.pallas import tpu as pltpu

EPS = 1e-6
# Set to jnp.bfloat16 to run the pointwise / patch matmuls on the bf16 MXU path
# (full rate on v5e/v6e/v7x, halves weight DMA bytes); f32 keeps reference numerics.
MATMUL_WEIGHT_DTYPE = jnp.float32


# ---------------------------------------------------------------------------
# Small helpers
# ---------------------------------------------------------------------------
def _round_up(x, m):
    return -(-x // m) * m


def _compiler_params(est_vmem_bytes=0):
    vmem = None
    if est_vmem_bytes > 12 * 2**20:   # above the most conservative (v5e 16 MiB) scoped default
        vmem = int(min(est_vmem_bytes + (4 << 20), 100 << 20))
    return pltpu.CompilerParams(dimension_semantics=("parallel",),
                                vmem_limit_bytes=vmem)


def _row_tile(M, bytes_per_row, budget=8 * 2**20, cap=1024):
    # biggest row tile (multiple of 8, or full extent) whose double-buffered tiles fit the budget
    t_cap = min(cap, max(8, (budget // max(bytes_per_row, 1)) // 8 * 8))
    if M <= t_cap:
        return M
    for t in range(t_cap, 7, -8):
        if M % t == 0:
            return t
    return t_cap  # irregular M: cdiv grid, Pallas masks the remainder block


# ---------------------------------------------------------------------------
# In-kernel math helpers
# ---------------------------------------------------------------------------
def _erf_poly(x):
    # Abramowitz & Stegun 7.1.26 (max abs err ~1.5e-7).
    # TODO(synk): Mosaic has no lax.erf lowering; exact-erf GELU is approximated to ~f32 precision.
    p = 0.3275911
    a1, a2, a3, a4, a5 = 0.254829592, -0.284496736, 1.421413741, -1.453152027, 1.061405429
    sgn = jnp.where(x < 0.0, -1.0, 1.0)
    ax = jnp.abs(x)
    d = 1.0 + p * ax
    t = pl.reciprocal(d, approx=True)     # EUP slot instead of a VALU divide
    t = t * (2.0 - d * t)                 # one Newton step back to ~f32 accuracy
    poly = ((((a5 * t + a4) * t + a3) * t + a2) * t + a1) * t
    return sgn * (1.0 - poly * jnp.exp(-ax * ax))


def _gelu_exact(x):
    return 0.5 * x * (1.0 + _erf_poly(x * 0.7071067811865476))


def _ln(y, w, b):
    # centered two-pass LN (matches F.layer_norm / channels_first LN numerics)
    mu = jnp.mean(y, axis=-1, keepdims=True)
    yc = y - mu
    var = jnp.mean(yc * yc, axis=-1, keepdims=True)
    return yc * jax.lax.rsqrt(var + EPS) * w + b


# ---------------------------------------------------------------------------
# Pallas kernels
# ---------------------------------------------------------------------------
def matmul_bias_kernel(x_ref, w_ref, b_ref, o_ref):
    o = jnp.dot(x_ref[...].astype(w_ref.dtype), w_ref[...],
                preferred_element_type=jnp.float32)
    o_ref[...] = (o + b_ref[...].astype(jnp.float32)).astype(o_ref.dtype)


def matmul_bias_ln_kernel(x_ref, w_ref, b_ref, lnw_ref, lnb_ref, o_ref):
    # patch-embed matmul with the channels_first LayerNorm fused as an epilogue
    o = jnp.dot(x_ref[...].astype(w_ref.dtype), w_ref[...],
                preferred_element_type=jnp.float32)
    o = o + b_ref[...].astype(jnp.float32)
    o = _ln(o, lnw_ref[...].astype(jnp.float32), lnb_ref[...].astype(jnp.float32))
    o_ref[...] = o.astype(o_ref.dtype)


def layernorm_kernel(x_ref, w_ref, b_ref, o_ref):
    x = x_ref[...].astype(jnp.float32)
    o_ref[...] = _ln(x, w_ref[...].astype(jnp.float32),
                     b_ref[...].astype(jnp.float32)).astype(o_ref.dtype)


def dual_layernorm_kernel(x_ref, wa_ref, ba_ref, wb_ref, bb_ref, oa_ref, ob_ref):
    # stage-output norm + next downsample's LN share one read of x and one set of statistics
    x = x_ref[...].astype(jnp.float32)
    mu = jnp.mean(x, axis=-1, keepdims=True)
    xc = x - mu
    xn = xc * jax.lax.rsqrt(jnp.mean(xc * xc, axis=-1, keepdims=True) + EPS)
    oa_ref[...] = (xn * wa_ref[...].astype(jnp.float32)
                   + ba_ref[...].astype(jnp.float32)).astype(oa_ref.dtype)
    ob_ref[...] = (xn * wb_ref[...].astype(jnp.float32)
                   + bb_ref[...].astype(jnp.float32)).astype(ob_ref.dtype)


def fused_block_kernel(x_ref, wt_ref, cb_ref, lnw_ref, lnb_ref,
                       w1_ref, b1_ref, w2_ref, b2_ref, g_ref,
                       o_ref, xp_ref, *, H, W, PH, PW, tap_groups):
    # Fused ConvNeXt / ConvNeXt-GC block: depthwise / GC conv (row-band + sublane-roll tap loop)
    # -> LN -> pwconv1 -> GELU -> pwconv2 -> layer-scale -> + residual.  Bt images per grid step.
    Bt, HW, C = x_ref.shape
    Hp, Wpa = xp_ref.shape[1], xp_ref.shape[2]
    sdt = xp_ref.dtype

    x_t = x_ref[...]                                   # (Bt, H*W, C), native dtype

    # zero only the thin halo border strips (every step: scratch is per-core under megacore
    # "parallel" splitting, so a one-time init guarded by program_id would be unsafe)
    if PH > 0:
        xp_ref[:, 0:PH, :, :] = jnp.zeros((Bt, PH, Wpa, C), sdt)
        xp_ref[:, PH + H:Hp, :, :] = jnp.zeros((Bt, PH, Wpa, C), sdt)
    if PW > 0:
        xp_ref[:, PH:PH + H, 0:PW, :] = jnp.zeros((Bt, H, PW, C), sdt)
    if Wpa > PW + W:
        xp_ref[:, PH:PH + H, PW + W:Wpa, :] = jnp.zeros((Bt, H, Wpa - PW - W, C), sdt)
    xp_ref[:, PH:PH + H, PW:PW + W, :] = x_t.reshape(Bt, H, W, C).astype(sdt)

    wt = wt_ref[...].astype(jnp.float32)               # (T, C) per-tap channel weights
    acc = jnp.zeros((Bt * H, Wpa, C), jnp.float32)
    for oh, cols in tap_groups:                        # static unroll over H offsets (free dim)
        band = xp_ref[:, oh:oh + H, :, :].reshape(Bt * H, Wpa, C).astype(jnp.float32)
        for t, ow in cols:                             # static unroll over W offsets
            shift = (PW - ow) % Wpa                    # W shift via XLU roll, wraps only into
            shifted = band if shift == 0 else pltpu.roll(band, shift, axis=1)  # discarded pad cols
            acc = acc + shifted * wt[t, :]

    # valid window of the padded-width accumulator -> tokens
    y = acc[:, PW:PW + W, :].reshape(Bt * HW, C) + cb_ref[...].astype(jnp.float32)

    h = _ln(y, lnw_ref[...].astype(jnp.float32), lnb_ref[...].astype(jnp.float32))
    h1 = jnp.dot(h.astype(w1_ref.dtype), w1_ref[...],
                 preferred_element_type=jnp.float32) + b1_ref[...].astype(jnp.float32)
    h1 = _gelu_exact(h1)
    h2 = jnp.dot(h1.astype(w2_ref.dtype), w2_ref[...],
                 preferred_element_type=jnp.float32) + b2_ref[...].astype(jnp.float32)

    out = x_t.reshape(Bt * HW, C).astype(jnp.float32) + g_ref[...].astype(jnp.float32) * h2
    o_ref[...] = out.reshape(Bt, HW, C).astype(o_ref.dtype)


# ---------------------------------------------------------------------------
# pallas_call wrappers
# ---------------------------------------------------------------------------
def pallas_matmul_bias(x, w, b):
    M, K = x.shape
    N = w.shape[1]
    item = x.dtype.itemsize
    TM = _row_tile(M, 2 * (K + N) * item)
    est = 2 * TM * (K + N) * item + 2 * (w.size * w.dtype.itemsize + N * b.dtype.itemsize)
    row = lambda i: (i, 0)
    vec = lambda i: (0, 0)
    return pl.pallas_call(
        matmul_bias_kernel,
        out_shape=jax.ShapeDtypeStruct((M, N), x.dtype),
        grid=(pl.cdiv(M, TM),),
        in_specs=[pl.BlockSpec((TM, K), row),
                  pl.BlockSpec((K, N), vec),
                  pl.BlockSpec((1, N), vec)],
        out_specs=pl.BlockSpec((TM, N), row),
        compiler_params=_compiler_params(est),
    )(x, w, b.reshape(1, N))


def pallas_matmul_bias_ln(x, w, b, ln_w, ln_b):
    M, K = x.shape
    N = w.shape[1]
    item = x.dtype.itemsize
    TM = _row_tile(M, 2 * (K + N) * item)
    est = 2 * TM * (K + N) * item + 2 * (w.size * w.dtype.itemsize + 3 * N * 4)
    row = lambda i: (i, 0)
    vec = lambda i: (0, 0)
    return pl.pallas_call(
        matmul_bias_ln_kernel,
        out_shape=jax.ShapeDtypeStruct((M, N), x.dtype),
        grid=(pl.cdiv(M, TM),),
        in_specs=[pl.BlockSpec((TM, K), row),
                  pl.BlockSpec((K, N), vec),
                  pl.BlockSpec((1, N), vec),
                  pl.BlockSpec((1, N), vec),
                  pl.BlockSpec((1, N), vec)],
        out_specs=pl.BlockSpec((TM, N), row),
        compiler_params=_compiler_params(est),
    )(x, w, b.reshape(1, N), ln_w.reshape(1, N), ln_b.reshape(1, N))


def pallas_layernorm(x2d, w, b):
    M, C = x2d.shape
    item = x2d.dtype.itemsize
    TM = _row_tile(M, 4 * C * item)
    row = lambda i: (i, 0)
    vec = lambda i: (0, 0)
    return pl.pallas_call(
        layernorm_kernel,
        out_shape=jax.ShapeDtypeStruct((M, C), x2d.dtype),
        grid=(pl.cdiv(M, TM),),
        in_specs=[pl.BlockSpec((TM, C), row),
                  pl.BlockSpec((1, C), vec),
                  pl.BlockSpec((1, C), vec)],
        out_specs=pl.BlockSpec((TM, C), row),
        compiler_params=_compiler_params(4 * TM * C * item),
    )(x2d, w.reshape(1, C), b.reshape(1, C))


def pallas_dual_layernorm(x2d, wa, ba, wb, bb):
    M, C = x2d.shape
    item = x2d.dtype.itemsize
    TM = _row_tile(M, 6 * C * item)
    row = lambda i: (i, 0)
    vec = lambda i: (0, 0)
    return pl.pallas_call(
        dual_layernorm_kernel,
        out_shape=(jax.ShapeDtypeStruct((M, C), x2d.dtype),
                   jax.ShapeDtypeStruct((M, C), x2d.dtype)),
        grid=(pl.cdiv(M, TM),),
        in_specs=[pl.BlockSpec((TM, C), row),
                  pl.BlockSpec((1, C), vec),
                  pl.BlockSpec((1, C), vec),
                  pl.BlockSpec((1, C), vec),
                  pl.BlockSpec((1, C), vec)],
        out_specs=(pl.BlockSpec((TM, C), row),
                   pl.BlockSpec((TM, C), row)),
        compiler_params=_compiler_params(6 * TM * C * item),
    )(x2d, wa.reshape(1, C), ba.reshape(1, C), wb.reshape(1, C), bb.reshape(1, C))


def pallas_fused_block(x_nhwc, taps_w, offsets, conv_b,
                       ln_w, ln_b, w1, b1, w2, b2, gamma, PH, PW):
    B, H, W, C = x_nhwc.shape
    HW = H * W
    T = taps_w.shape[0]
    H4 = w1.shape[1]
    Hp = H + 2 * PH
    Wpa = _round_up(W + 2 * PW, 8)     # sublane-aligned padded width (roll-friendly, zero-filled)
    item = x_nhwc.dtype.itemsize

    nb = lambda a: a.size * a.dtype.itemsize
    weight_bytes = 2 * sum(nb(a) for a in (taps_w, conv_b, ln_w, ln_b, w1, b1, w2, b2, gamma))
    per_b = (4 * HW * C + Hp * Wpa * C) * item   # double-buffered in+out tiles + halo scratch

    # batch tile: lift matmul M (= Bt*H*W) toward >=256 rows within a conservative VMEM budget
    Bt = 1
    for d in range(1, B + 1):
        if B % d:
            continue
        if d > 1 and weight_bytes + d * per_b > 12 * 2**20:
            break
        Bt = d
        if d * HW >= 256:
            break

    groups = {}
    for t, (oh, ow) in enumerate(offsets):
        groups.setdefault(oh, []).append((t, ow))
    tap_groups = tuple((oh, tuple(cols)) for oh, cols in sorted(groups.items()))

    kern = functools.partial(fused_block_kernel, H=H, W=W, PH=PH, PW=PW,
                             tap_groups=tap_groups)
    xmap = lambda b: (b, 0, 0)
    vec = lambda b: (0, 0)
    y = pl.pallas_call(
        kern,
        out_shape=jax.ShapeDtypeStruct((B, HW, C), x_nhwc.dtype),
        grid=(B // Bt,),
        in_specs=[pl.BlockSpec((Bt, HW, C), xmap),
                  pl.BlockSpec((T, C), vec),
                  pl.BlockSpec((1, C), vec),
                  pl.BlockSpec((1, C), vec),
                  pl.BlockSpec((1, C), vec),
                  pl.BlockSpec((C, H4), vec),
                  pl.BlockSpec((1, H4), vec),
                  pl.BlockSpec((H4, C), vec),
                  pl.BlockSpec((1, C), vec),
                  pl.BlockSpec((1, C), vec)],
        out_specs=pl.BlockSpec((Bt, HW, C), xmap),
        scratch_shapes=[pltpu.VMEM((Bt, Hp, Wpa, C), x_nhwc.dtype)],
        compiler_params=_compiler_params(weight_bytes + Bt * per_b),
    )(x_nhwc.reshape(B, HW, C), taps_w, conv_b.reshape(1, C),
      ln_w.reshape(1, C), ln_b.reshape(1, C),
      w1, b1.reshape(1, H4), w2, b2.reshape(1, C), gamma.reshape(1, C))
    return y.reshape(B, H, W, C)


# ---------------------------------------------------------------------------
# Model glue (pure JAX reshapes / layout plumbing)
# ---------------------------------------------------------------------------
def patchify(x_nhwc, k):
    # non-overlapping kxk patches; flattened K order is (c_in, kh, kw) to match
    # the PyTorch Conv2d weight layout (Cout, Cin, kh, kw).
    B, H, W, C = x_nhwc.shape
    x = x_nhwc.reshape(B, H // k, k, W // k, k, C)
    x = x.transpose(0, 1, 3, 5, 2, 4)
    return x.reshape(B * (H // k) * (W // k), C * k * k), (B, H // k, W // k)


def conv_patch(p, x_nhwc, k, ln=None):
    # strided kxk conv as a patch matmul; no host-side K padding (Mosaic pads the MXU K tile).
    tokens, (B, Ho, Wo) = patchify(x_nhwc, k)
    w = p['w']
    N = w.shape[1]
    if ln is None:
        y = pallas_matmul_bias(tokens, w, p['b'])
    else:
        y = pallas_matmul_bias_ln(tokens, w, p['b'], ln['w'], ln['b'])
    return y.reshape(B, Ho, Wo, N)


def convnext_block_fwd(p, x):
    KH, KW, C = p['dw_w'].shape
    taps_w = p['dw_w'].reshape(KH * KW, C)
    offsets = tuple((kh, kw) for kh in range(KH) for kw in range(KW))
    return pallas_fused_block(x, taps_w, offsets, p['dw_b'],
                              p['ln_w'], p['ln_b'], p['w1'], p['b1'],
                              p['w2'], p['b2'], p['gamma'],
                              PH=(KH - 1) // 2, PW=(KW - 1) // 2)


def convnext_gc_block_fwd(p, x):
    # Both half-channel 1-D global convs run inside ONE fused kernel: the H-direction taps carry
    # weights that are zero on the second channel half (and vice versa), so no channel split /
    # concat HBM passes are needed and the result is bit-identical.
    pad = p['pad']
    gks = p['gch_w'].shape[0]
    half = p['gch_w'].shape[2]
    z = jnp.zeros((gks, half), p['gch_w'].dtype)
    wh = jnp.concatenate([p['gch_w'][:, 0, :], z], axis=1)     # (gks, C)
    ww = jnp.concatenate([z, p['gcw_w'][0, :, :]], axis=1)     # (gks, C)
    taps_w = jnp.concatenate([wh, ww], axis=0)                 # (2*gks, C)
    conv_b = jnp.concatenate([p['gch_b'], p['gcw_b']])
    offsets = tuple((k, pad) for k in range(gks)) + tuple((pad, k) for k in range(gks))
    return pallas_fused_block(x, taps_w, offsets, conv_b,
                              p['ln_w'], p['ln_b'], p['w1'], p['b1'],
                              p['w2'], p['b2'], p['gamma'], PH=pad, PW=pad)


def forward(params, x_nchw):
    # drop_path_rate = 0.0 -> DropPath is identity (reference default).
    x = jnp.transpose(x_nchw, (0, 2, 3, 1))  # NCHW -> NHWC
    outs = []
    for i in range(4):
        ds = params['downsample'][i]
        if i == 0:
            # stem: 4x4 stride-4 conv with the channels_first LN fused as a matmul epilogue
            x = conv_patch(ds['conv'], x, 4, ln=ds['norm'])
        else:
            # the downsample LN was already applied by the dual-LN kernel at the end of stage i-1
            x = conv_patch(ds['conv'], x, 2)
        for blk in params['stages'][i]:
            if blk['kind'] == 'plain':
                x = convnext_block_fwd(blk, x)
            else:
                x = convnext_gc_block_fwd(blk, x)
        B, H, W, C = x.shape
        xt = x.reshape(B * H * W, C)
        on = params['norms'][i]
        if i < 3:
            dsn = params['downsample'][i + 1]['norm']
            xo, xn = pallas_dual_layernorm(xt, on['w'], on['b'], dsn['w'], dsn['b'])
            x = xn.reshape(B, H, W, C)
        else:
            xo = pallas_layernorm(xt, on['w'], on['b'])
        outs.append(jnp.transpose(xo.reshape(B, H, W, C), (0, 3, 1, 2)))  # back to NCHW
    return tuple(outs)


# ---------------------------------------------------------------------------
# Deterministic parameter construction (trunc_normal std=0.02, zero biases,
# unit LN weights, gamma = layer_scale_init_value)
# ---------------------------------------------------------------------------
def init_params(key, in_chans, depths, dims, gcc_bs_indices, stages_rs, lsiv=1e-6):
    keys = iter(jax.random.split(key, 512))
    tn = lambda shape: jax.random.truncated_normal(next(keys), -2.0, 2.0, shape, jnp.float32) * 0.02
    wdt = MATMUL_WEIGHT_DTYPE

    params = {'downsample': [], 'stages': [], 'norms': []}
    # stem: Conv2d(in_chans, dims[0], 4, stride=4) + channels_first LN
    params['downsample'].append({
        'conv': {'w': tn((in_chans * 16, dims[0])).astype(wdt),
                 'b': jnp.zeros((dims[0],), jnp.float32)},
        'norm': {'w': jnp.ones((dims[0],), jnp.float32), 'b': jnp.zeros((dims[0],), jnp.float32)},
    })
    for i in range(3):
        params['downsample'].append({
            'norm': {'w': jnp.ones((dims[i],), jnp.float32), 'b': jnp.zeros((dims[i],), jnp.float32)},
            'conv': {'w': tn((dims[i] * 4, dims[i + 1])).astype(wdt),
                     'b': jnp.zeros((dims[i + 1],), jnp.float32)},
        })
    for i in range(4):
        dim = dims[i]
        blocks = []
        for j in range(depths[i]):
            common = {
                'ln_w': jnp.ones((dim,), jnp.float32), 'ln_b': jnp.zeros((dim,), jnp.float32),
                'w1': tn((dim, 4 * dim)).astype(wdt), 'b1': jnp.zeros((4 * dim,), jnp.float32),
                'w2': tn((4 * dim, dim)).astype(wdt), 'b2': jnp.zeros((dim,), jnp.float32),
                'gamma': jnp.full((dim,), lsiv, jnp.float32),
            }
            if j < gcc_bs_indices[i]:
                blk = dict(kind='plain',
                           dw_w=tn((7, 7, dim)), dw_b=jnp.zeros((dim,), jnp.float32), **common)
            else:
                gk = stages_rs[i]
                gks = gk - 1 if gk % 2 == 0 else gk
                pad = (gks - 1) // 2
                half = dim // 2
                blk = dict(kind='gc', pad=pad,
                           gch_w=tn((gks, 1, half)), gch_b=jnp.zeros((half,), jnp.float32),
                           gcw_w=tn((1, gks, half)), gcw_b=jnp.zeros((half,), jnp.float32),
                           **common)
            blocks.append(blk)
        params['stages'].append(blocks)
        params['norms'].append({'w': jnp.ones((dim,), jnp.float32),
                                'b': jnp.zeros((dim,), jnp.float32)})
    return params


if __name__ == "__main__":
    # Small config consistent with the module's structure.
    in_chans = 3
    depths = [2, 2, 2, 2]
    dims = [8, 16, 32, 64]
    gcc_bs_indices = [1, 1, 1, 1]       # j < idx -> plain ConvNeXt block, else GC block
    stages_rs = [16, 8, 4, 2]           # per-stage spatial resolution for a 64x64 input

    key = jax.random.PRNGKey(0)
    kp, kx = jax.random.split(key)
    params = init_params(kp, in_chans, depths, dims, gcc_bs_indices, stages_rs)
    x = jax.random.normal(kx, (2, in_chans, 64, 64), jnp.float32)

    outs = jax.block_until_ready(forward(params, x))
    expected = [(2, dims[i], stages_rs[i], stages_rs[i]) for i in range(4)]
    assert len(outs) == 4
    for o, e in zip(outs, expected):
        assert o.shape == e, (o.shape, e)
        assert bool(jnp.all(jnp.isfinite(o)))
    print("KERNEL_OK")
</pallas_src>

<mosaic_0001>
module attributes {stable_mosaic.version = 11 : i64} {
  func.func @matmul_bias_ln_kernel(%arg0: i32, %arg1: memref<512x48xf32, #tpu.memory_space<vmem>>, %arg2: memref<48x8xf32, #tpu.memory_space<vmem>>, %arg3: memref<1x8xf32, #tpu.memory_space<vmem>>, %arg4: memref<1x8xf32, #tpu.memory_space<vmem>>, %arg5: memref<1x8xf32, #tpu.memory_space<vmem>>, %arg6: memref<512x8xf32, #tpu.memory_space<vmem>>) attributes {dimension_semantics = [#tpu.dimension_semantics<parallel>], iteration_bounds = array<i64: 1>, scalar_prefetch = 0 : i64, scratch_operands = 0 : i64, tpu.core_type = #tpu.core_type<tc>, window_params = [{transform_indices = @transform_0, window_bounds = array<i64: 512, 48>}, {pipeline_mode = #tpu.pipeline_mode<synchronous>, transform_indices = @transform_1, window_bounds = array<i64: 48, 8>}, {pipeline_mode = #tpu.pipeline_mode<synchronous>, transform_indices = @transform_2, window_bounds = array<i64: 1, 8>}, {pipeline_mode = #tpu.pipeline_mode<synchronous>, transform_indices = @transform_3, window_bounds = array<i64: 1, 8>}, {pipeline_mode = #tpu.pipeline_mode<synchronous>, transform_indices = @transform_4, window_bounds = array<i64: 1, 8>}, {transform_indices = @transform_5, window_bounds = array<i64: 512, 8>}]} {
    %c0 = arith.constant 0 : index
    %c0_0 = arith.constant 0 : index
    %0 = vector.load %arg1[%c0, %c0_0] : memref<512x48xf32, #tpu.memory_space<vmem>>, vector<512x48xf32>
    %c0_1 = arith.constant 0 : index
    %c0_2 = arith.constant 0 : index
    %1 = vector.load %arg2[%c0_1, %c0_2] : memref<48x8xf32, #tpu.memory_space<vmem>>, vector<48x8xf32>
    %cst = arith.constant dense<0.000000e+00> : vector<512x8xf32>
    %2 = tpu.matmul %0, %1, %cst {dimension_numbers = #tpu.dot_dimension_numbers<[1], [0], [0], [1], [0, 0, 1, 1], [], []>} : vector<512x48xf32>, vector<48x8xf32>, vector<512x8xf32> -> vector<512x8xf32>
    %c0_3 = arith.constant 0 : index
    %c0_4 = arith.constant 0 : index
    %3 = vector.load %arg3[%c0_3, %c0_4] : memref<1x8xf32, #tpu.memory_space<vmem>>, vector<1x8xf32>
    %4 = vector.broadcast %3 : vector<1x8xf32> to vector<512x8xf32>
    %5 = arith.addf %2, %4 : vector<512x8xf32>
    %c0_5 = arith.constant 0 : index
    %c0_6 = arith.constant 0 : index
    %6 = vector.load %arg4[%c0_5, %c0_6] : memref<1x8xf32, #tpu.memory_space<vmem>>, vector<1x8xf32>
    %c0_7 = arith.constant 0 : index
    %c0_8 = arith.constant 0 : index
    %7 = vector.load %arg5[%c0_7, %c0_8] : memref<1x8xf32, #tpu.memory_space<vmem>>, vector<1x8xf32>
    %cst_9 = arith.constant dense<0.000000e+00> : vector<512xf32>
    %8 = vector.multi_reduction <add>, %5, %cst_9 [1] : vector<512x8xf32> to vector<512xf32>
    %9 = vector.shape_cast %8 : vector<512xf32> to vector<512x1xf32>
    %cst_10 = arith.constant 8.000000e+00 : f32
    %10 = vector.broadcast %cst_10 : f32 to vector<512x1xf32>
    %11 = arith.divf %9, %10 : vector<512x1xf32>
    %12 = vector.broadcast %11 : vector<512x1xf32> to vector<512x8xf32>
    %13 = arith.subf %5, %12 : vector<512x8xf32>
    %14 = arith.mulf %13, %13 : vector<512x8xf32>
    %cst_11 = arith.constant dense<0.000000e+00> : vector<512xf32>
    %15 = vector.multi_reduction <add>, %14, %cst_11 [1] : vector<512x8xf32> to vector<512xf32>
    %16 = vector.shape_cast %15 : vector<512xf32> to vector<512x1xf32>
    %cst_12 = arith.constant 8.000000e+00 : f32
    %17 = vector.broadcast %cst_12 : f32 to vector<512x1xf32>
    %18 = arith.divf %16, %17 : vector<512x1xf32>
    %cst_13 = arith.constant 9.99999997E-7 : f32
    %19 = vector.broadcast %cst_13 : f32 to vector<512x1xf32>
    %20 = arith.addf %18, %19 : vector<512x1xf32>
    %21 = math.rsqrt %20 : vector<512x1xf32>
    %22 = vector.broadcast %21 : vector<512x1xf32> to vector<512x8xf32>
    %23 = arith.mulf %13, %22 : vector<512x8xf32>
    %24 = vector.broadcast %6 : vector<1x8xf32> to vector<512x8xf32>
    %25 = arith.mulf %23, %24 : vector<512x8xf32>
    %26 = vector.broadcast %7 : vector<1x8xf32> to vector<512x8xf32>
    %27 = arith.addf %25, %26 : vector<512x8xf32>
    %c0_14 = arith.constant 0 : index
    %c0_15 = arith.constant 0 : index
    %28 = vector.load %arg6[%c0_14, %c0_15] : memref<512x8xf32, #tpu.memory_space<vmem>>, vector<512x8xf32>
    tpu.vector_store %arg6[%c0_14, %c0_15], %27 {strides = array<i32>} : memref<512x8xf32, #tpu.memory_space<vmem>>, vector<512x8xf32>,
    return
  }
  func.func @transform_0(%arg0: i32) -> (i32, i32) {
    %c0_i32 = arith.constant 0 : i32
    %c0_i32_0 = arith.constant 0 : i32
    return %arg0, %c0_i32 : i32, i32
  }
  func.func @transform_1(%arg0: i32) -> (i32, i32) {
    %c0_i32 = arith.constant 0 : i32
    %c0_i32_0 = arith.constant 0 : i32
    %c0_i32_1 = arith.constant 0 : i32
    return %c0_i32, %c0_i32_0 : i32, i32
  }
  func.func @transform_2(%arg0: i32) -> (i32, i32) {
    %c0_i32 = arith.constant 0 : i32
    %c0_i32_0 = arith.constant 0 : i32
    %c0_i32_1 = arith.constant 0 : i32
    return %c0_i32, %c0_i32_0 : i32, i32
  }
  func.func @transform_3(%arg0: i32) -> (i32, i32) {
    %c0_i32 = arith.constant 0 : i32
    %c0_i32_0 = arith.constant 0 : i32
    %c0_i32_1 = arith.constant 0 : i32
    return %c0_i32, %c0_i32_0 : i32, i32
  }
  func.func @transform_4(%arg0: i32) -> (i32, i32) {
    %c0_i32 = arith.constant 0 : i32
    %c0_i32_0 = arith.constant 0 : i32
    %c0_i32_1 = arith.constant 0 : i32
    return %c0_i32, %c0_i32_0 : i32, i32
  }
  func.func @transform_5(%arg0: i32) -> (i32, i32) {
    %c0_i32 = arith.constant 0 : i32
    %c0_i32_0 = arith.constant 0 : i32
    return %arg0, %c0_i32 : i32, i32
  }
}

</mosaic_0001>

<llo_original>
// kernel: tpu_custom_call.1
$region0: #{tpu_custom_call.1}
  #allocation0 [shape = 'u32[]', space=smem, size = 0x4, offset = 0x4, fixed_abs, tag = 'smem constant byte address 0x4 - core index']
  #allocation1 [shape = 'u32[144,128]{1,0:T(1,128)}', space=vmem, size = 0x12000, scoped, tag = 'internal scratch']
  %s0 = inlined_call_operand.vmem [shape: f32[512,48], index: 0, kind: input, shape index: {}]
  %s1 = inlined_call_operand.vmem [shape: f32[48,8], index: 1, kind: input, shape index: {}]
  %s2 = inlined_call_operand.vmem [shape: f32[1,8], index: 2, kind: input, shape index: {}]
  %s3 = inlined_call_operand.vmem [shape: f32[1,8], index: 3, kind: input, shape index: {}]
  %s4 = inlined_call_operand.vmem [shape: f32[1,8], index: 4, kind: input, shape index: {}]
  %s5 = inlined_call_operand.vmem [shape: f32[512,8], index: 5, kind: output, shape index: {}]
  %s6 = sld [smem:[#allocation0]]
  $region30: #{tpu_custom_call.1} parent=0
    _
  %s8 = ssub.s32 1, %s6
  %s9 = scalar_select 0, %s8, %s6
  // Predicated region
  $region2: #{tpu_custom_call.1} parent=0 // pred_check
    _
  $region3: #{tpu_custom_call.1} parent=0 // pred_check_branch
    %11 = sbr.rel (0) target = $region5
  $region4: #{tpu_custom_call.1} parent=0 // pred_region
    _
  $region5: #{tpu_custom_call.1} parent=0 // pred_fallthru
    _
  // Predicated region
  $region6: #{tpu_custom_call.1} parent=0 // pred_check
    _
  $region7: #{tpu_custom_call.1} parent=0 // pred_check_branch
    %13 = sbr.rel (0) target = $region9
  $region8: #{tpu_custom_call.1} parent=0 // pred_region
    _
  $region9: #{tpu_custom_call.1} parent=0 // pred_fallthru
    _
  // Predicated region
  $region10: #{tpu_custom_call.1} parent=0 // pred_check
    _
  $region11: #{tpu_custom_call.1} parent=0 // pred_check_branch
    %15 = sbr.rel (0) target = $region13
  $region12: #{tpu_custom_call.1} parent=0 // pred_region
    _
  $region13: #{tpu_custom_call.1} parent=0 // pred_fallthru
    _
  // Predicated region
  $region14: #{tpu_custom_call.1} parent=0 // pred_check
    _
  $region15: #{tpu_custom_call.1} parent=0 // pred_check_branch
    %17 = sbr.rel (0) target = $region17
  $region16: #{tpu_custom_call.1} parent=0 // pred_region
    _
  $region17: #{tpu_custom_call.1} parent=0 // pred_fallthru
    _
  // Predicated region
  $region18: #{tpu_custom_call.1} parent=0 // pred_check
    _
  $region19: #{tpu_custom_call.1} parent=0 // pred_check_branch
    %19 = sbr.rel (0) target = $region21
  $region20: #{tpu_custom_call.1} parent=0 // pred_region
    _
  $region21: #{tpu_custom_call.1} parent=0 // pred_fallthru
    _
  %v20 = vld [vmem:[%s0] sm:$0xff]
  %v21 = vld [vmem:[%s0 + $0x8] sm:$0xff]
  %v22 = vld [vmem:[%s0 + $0x10] sm:$0xff]
  %v23 = vld [vmem:[%s0 + $0x18] sm:$0xff]
  %v24 = vld [vmem:[%s0 + $0x20] sm:$0xff]
  %v25 = vld [vmem:[%s0 + $0x28] sm:$0xff]
  %v26 = vld [vmem:[%s0 + $0x30] sm:$0xff]
  %v27 = vld [vmem:[%s0 + $0x38] sm:$0xff]
  %v28 = vld [vmem:[%s0 + $0x40] sm:$0xff]
  %v29 = vld [vmem:[%s0 + $0x48] sm:$0xff]
  %v30 = vld [vmem:[%s0 + $0x50] sm:$0xff]
  %v31 = vld [vmem:[%s0 + $0x58] sm:$0xff]
  %v32 = vld [vmem:[%s0 + $0x60] sm:$0xff]
  %v33 = vld [vmem:[%s0 + $0x68] sm:$0xff]
  %v34 = vld [vmem:[%s0 + $0x70] sm:$0xff]
  %v35 = vld [vmem:[%s0 + $0x78] sm:$0xff]
  %v36 = vld [vmem:[%s0 + $0x80] sm:$0xff]
  %v37 = vld [vmem:[%s0 + $0x88] sm:$0xff]
  %v38 = vld [vmem:[%s0 + $0x90] sm:$0xff]
  %v39 = vld [vmem:[%s0 + $0x98] sm:$0xff]
  %v40 = vld [vmem:[%s0 + $0xa0] sm:$0xff]
  %v41 = vld [vmem:[%s0 + $0xa8] sm:$0xff]
  %v42 = vld [vmem:[%s0 + $0xb0] sm:$0xff]
  %v43 = vld [vmem:[%s0 + $0xb8] sm:$0xff]
  %v44 = vld [vmem:[%s0 + $0xc0] sm:$0xff]
  %v45 = vld [vmem:[%s0 + $0xc8] sm:$0xff]
  %v46 = vld [vmem:[%s0 + $0xd0] sm:$0xff]
  %v47 = vld [vmem:[%s0 + $0xd8] sm:$0xff]
  %v48 = vld [vmem:[%s0 + $0xe0] sm:$0xff]
  %v49 = vld [vmem:[%s0 + $0xe8] sm:$0xff]
  %v50 = vld [vmem:[%s0 + $0xf0] sm:$0xff]
  %v51 = vld [vmem:[%s0 + $0xf8] sm:$0xff]
  %v52 = vld [vmem:[%s0 + $0x100] sm:$0xff]
  %v53 = vld [vmem:[%s0 + $0x108] sm:$0xff]
  %v54 = vld [vmem:[%s0 + $0x110] sm:$0xff]
  %v55 = vld [vmem:[%s0 + $0x118] sm:$0xff]
  %v56 = vld [vmem:[%s0 + $0x120] sm:$0xff]
  %v57 = vld [vmem:[%s0 + $0x128] sm:$0xff]
  %v58 = vld [vmem:[%s0 + $0x130] sm:$0xff]
  %v59 = vld [vmem:[%s0 + $0x138] sm:$0xff]
  %v60 = vld [vmem:[%s0 + $0x140] sm:$0xff]
  %v61 = vld [vmem:[%s0 + $0x148] sm:$0xff]
  %v62 = vld [vmem:[%s0 + $0x150] sm:$0xff]
  %v63 = vld [vmem:[%s0 + $0x158] sm:$0xff]
  %v64 = vld [vmem:[%s0 + $0x160] sm:$0xff]
  %v65 = vld [vmem:[%s0 + $0x168] sm:$0xff]
  %v66 = vld [vmem:[%s0 + $0x170] sm:$0xff]
  %v67 = vld [vmem:[%s0 + $0x178] sm:$0xff]
  %v68 = vld [vmem:[%s0 + $0x180] sm:$0xff]
  %v69 = vld [vmem:[%s0 + $0x188] sm:$0xff]
  %v70 = vld [vmem:[%s0 + $0x190] sm:$0xff]
  %v71 = vld [vmem:[%s0 + $0x198] sm:$0xff]
  %v72 = vld [vmem:[%s0 + $0x1a0] sm:$0xff]
  %v73 = vld [vmem:[%s0 + $0x1a8] sm:$0xff]
  %v74 = vld [vmem:[%s0 + $0x1b0] sm:$0xff]
  %v75 = vld [vmem:[%s0 + $0x1b8] sm:$0xff]
  %v76 = vld [vmem:[%s0 + $0x1c0] sm:$0xff]
  %v77 = vld [vmem:[%s0 + $0x1c8] sm:$0xff]
  %v78 = vld [vmem:[%s0 + $0x1d0] sm:$0xff]
  %v79 = vld [vmem:[%s0 + $0x1d8] sm:$0xff]
  %v80 = vld [vmem:[%s0 + $0x1e0] sm:$0xff]
  %v81 = vld [vmem:[%s0 + $0x1e8] sm:$0xff]
  %v82 = vld [vmem:[%s0 + $0x1f0] sm:$0xff]
  %v83 = vld [vmem:[%s0 + $0x1f8] sm:$0xff]
  %v84 = vld [vmem:[%s1] sm:$0xff]
  %v85 = vld [vmem:[%s1 + $0x8] sm:$0xff]
  %v86 = vld [vmem:[%s1 + $0x10] sm:$0xff]
  %v87 = vld [vmem:[%s1 + $0x18] sm:$0xff]
  %v88 = vld [vmem:[%s1 + $0x20] sm:$0xff]
  %v89 = vld [vmem:[%s1 + $0x28] sm:$0xff]
  %v90 = vld [vmem:[%s2] sm:$0x1]
  %v92 = vlaneseq
  %v93 = vshrl.u32 %v92, 7
  %v94 = vsub.s32 0, %v93
  %v95 = vrot.slane %v90, %v94
  %vm97 = vcmask 392192
  %v99 = vsel %vm97, %v20, 0
  %v102 = vsel %vm97, %v21, 0
  %v105 = vsel %vm97, %v22, 0
  %v108 = vsel %vm97, %v23, 0
  %v111 = vsel %vm97, %v24, 0
  %v114 = vsel %vm97, %v25, 0
  %v117 = vsel %vm97, %v26, 0
  %v120 = vsel %vm97, %v27, 0
  %v123 = vsel %vm97, %v28, 0
  %v126 = vsel %vm97, %v29, 0
  %v129 = vsel %vm97, %v30, 0
  %v132 = vsel %vm97, %v31, 0
  %v135 = vsel %vm97, %v32, 0
  %v138 = vsel %vm97, %v33, 0
  %v141 = vsel %vm97, %v34, 0
  %v144 = vsel %vm97, %v35, 0
  %v147 = vsel %vm97, %v36, 0
  %v150 = vsel %vm97, %v37, 0
  %v153 = vsel %vm97, %v38, 0
  %v156 = vsel %vm97, %v39, 0
  %v159 = vsel %vm97, %v40, 0
  %v162 = vsel %vm97, %v41, 0
  %v165 = vsel %vm97, %v42, 0
  %v168 = vsel %vm97, %v43, 0
  %v171 = vsel %vm97, %v44, 0
  %v174 = vsel %vm97, %v45, 0
  %v177 = vsel %vm97, %v46, 0
  %v180 = vsel %vm97, %v47, 0
  %v183 = vsel %vm97, %v48, 0
  %v186 = vsel %vm97, %v49, 0
  %v189 = vsel %vm97, %v50, 0
  %v192 = vsel %vm97, %v51, 0
  %v195 = vsel %vm97, %v52, 0
  %v198 = vsel %vm97, %v53, 0
  %v201 = vsel %vm97, %v54, 0
  %v204 = vsel %vm97, %v55, 0
  %v207 = vsel %vm97, %v56, 0
  %v210 = vsel %vm97, %v57, 0
  %v213 = vsel %vm97, %v58, 0
  %v216 = vsel %vm97, %v59, 0
  %v219 = vsel %vm97, %v60, 0
  %v222 = vsel %vm97, %v61, 0
  %v225 = vsel %vm97, %v62, 0
  %v228 = vsel %vm97, %v63, 0
  %v231 = vsel %vm97, %v64, 0
  %v234 = vsel %vm97, %v65, 0
  %v237 = vsel %vm97, %v66, 0
  %v240 = vsel %vm97, %v67, 0
  %v243 = vsel %vm97, %v68, 0
  %v246 = vsel %vm97, %v69, 0
  %v249 = vsel %vm97, %v70, 0
  %v252 = vsel %vm97, %v71, 0
  %v255 = vsel %vm97, %v72, 0
  %v258 = vsel %vm97, %v73, 0
  %v261 = vsel %vm97, %v74, 0
  %v264 = vsel %vm97, %v75, 0
  %v267 = vsel %vm97, %v76, 0
  %v270 = vsel %vm97, %v77, 0
  %v273 = vsel %vm97, %v78, 0
  %v276 = vsel %vm97, %v79, 0
  %v279 = vsel %vm97, %v80, 0
  %v282 = vsel %vm97, %v81, 0
  %v285 = vsel %vm97, %v82, 0
  %v288 = vsel %vm97, %v83, 0
  %290 = vmatprep.subr.mxu0 0.0
  %291 = vmatpush1.msra.mxu0 0.0
  %292 = vmatprep.subr.mxu0 0.0
  %293 = vmatpush1.msra.mxu0 0.0
  %294 = vmatprep.subr.mxu0 0.0
  %295 = vmatpush1.msra.mxu0 0.0
  %296 = vmatprep.subr.mxu0 0.0
  %297 = vmatpush1.msra.mxu0 0.0
  %298 = vmatprep.subr.mxu0 0.0
  %299 = vmatpush1.msra.mxu0 0.0
  %300 = vmatprep.subr.mxu0 0.0
  %301 = vmatpush1.msra.mxu0 0.0
  %302 = vmatprep.subr.mxu0 0.0
  %303 = vmatpush1.msra.mxu0 0.0
  %304 = vmatprep.subr.mxu0 0.0
  %305 = vmatpush1.msra.mxu0 0.0
  %306 = vmatprep.subr.mxu0 0.0
  %307 = vmatpush1.msra.mxu0 0.0
  %308 = vmatprep.subr.mxu0 0.0
  %309 = vmatpush1.msra.mxu0 0.0
  %310 = vmatprep.subr.mxu0 0.0
  %311 = vmatpush1.msra.mxu0 %v89
  %312 = vmatprep.subr.mxu0 0.0
  %313 = vmatpush1.msra.mxu0 %v88
  %314 = vmatprep.subr.mxu0 0.0
  %315 = vmatpush1.msra.mxu0 %v87
  %316 = vmatprep.subr.mxu0 0.0
  %317 = vmatpush1.msra.mxu0 %v86
  %318 = vmatprep.subr.mxu0 0.0
  %319 = vmatpush1.msra.mxu0 %v85
  %320 = vmatprep.subr.mxu0 0.0
  %321 = vmatpush1.msra.mxu0 %v84
  %322 = vmatprep.subr.mxu0 0.0
  %323 = vmatpush2.msra.mxu0 0.0
  %324 = vmatprep.subr.mxu0 0.0
  %325 = vmatpush2.msra.mxu0 0.0
  %326 = vmatprep.subr.mxu0 0.0
  %327 = vmatpush2.msra.mxu0 0.0
  %328 = vmatprep.subr.mxu0 0.0
  %329 = vmatpush2.msra.mxu0 0.0
  %330 = vmatprep.subr.mxu0 0.0
  %331 = vmatpush2.msra.mxu0 0.0
  %332 = vmatprep.subr.mxu0 0.0
  %333 = vmatpush2.msra.mxu0 0.0
  %334 = vmatprep.subr.mxu0 0.0
  %335 = vmatpush2.msra.mxu0 0.0
  %336 = vmatprep.subr.mxu0 0.0
  %337 = vmatpush2.msra.mxu0 0.0
  %338 = vmatprep.subr.mxu0 0.0
  %339 = vmatpush2.msra.mxu0 0.0
  %340 = vmatprep.subr.mxu0 0.0
  %341 = vmatpush2.msra.mxu0 0.0
  %342 = vmatprep.subr.mxu0 0.0
  %343 = vmatpush2.msra.mxu0 0.0
  %344 = vmatprep.subr.mxu0 0.0
  %345 = vmatpush2.msra.mxu0 0.0
  %346 = vmatprep.subr.mxu0 0.0
  %347 = vmatpush2.msra.mxu0 0.0
  %348 = vmatprep.subr.mxu0 0.0
  %349 = vmatpush2.msra.mxu0 0.0
  %350 = vmatprep.subr.mxu0 0.0
  %351 = vmatpush2.msra.mxu0 0.0
  %352 = vmatprep.subr.mxu0 0.0
  %353 = vmatpush2.msra.mxu0 0.0
  %354 = vmatprep.mubr.f32.mxu0 0.0
  %355 = vmatmul.mubr.f32.gmra.mxu0 %v99
  %v356 = vpop.f32.mrf.mxu0
  %v357 = vadd.f32 %v95, %v356
  %v358 = vpop.f32.mrf.mxu0
  %359 = vmatprep.mubr.f32.mxu0 0.0
  %360 = vmatmul.mubr.f32.gmra.mxu0 %v102
  %v361 = vpop.f32.mrf.mxu0
  %v362 = vadd.f32 %v95, %v361
  %v363 = vpop.f32.mrf.mxu0
  %364 = vmatprep.mubr.f32.mxu0 0.0
  %365 = vmatmul.mubr.f32.gmra.mxu0 %v105
  %v366 = vpop.f32.mrf.mxu0
  %v367 = vadd.f32 %v95, %v366
  %v368 = vpop.f32.mrf.mxu0
  %369 = vmatprep.mubr.f32.mxu0 0.0
  %370 = vmatmul.mubr.f32.gmra.mxu0 %v108
  %v371 = vpop.f32.mrf.mxu0
  %v372 = vadd.f32 %v95, %v371
  %v373 = vpop.f32.mrf.mxu0
  %374 = vmatprep.mubr.f32.mxu0 0.0
  %375 = vmatmul.mubr.f32.gmra.mxu0 %v111
  %v376 = vpop.f32.mrf.mxu0
  %v377 = vadd.f32 %v95, %v376
  %v378 = vpop.f32.mrf.mxu0
  %379 = vmatprep.mubr.f32.mxu0 0.0
  %380 = vmatmul.mubr.f32.gmra.mxu0 %v114
  %v381 = vpop.f32.mrf.mxu0
  %v382 = vadd.f32 %v95, %v381
  %v383 = vpop.f32.mrf.mxu0
  %384 = vmatprep.mubr.f32.mxu0 0.0
  %385 = vmatmul.mubr.f32.gmra.mxu0 %v117
  %v386 = vpop.f32.mrf.mxu0
  %v387 = vadd.f32 %v95, %v386
  %v388 = vpop.f32.mrf.mxu0
  %389 = vmatprep.mubr.f32.mxu0 0.0
  %390 = vmatmul.mubr.f32.gmra.mxu0 %v120
  %v391 = vpop.f32.mrf.mxu0
  %v392 = vadd.f32 %v95, %v391
  %v393 = vpop.f32.mrf.mxu0
  %394 = vmatprep.mubr.f32.mxu0 0.0
  %395 = vmatmul.mubr.f32.gmra.mxu0 %v123
  %v396 = vpop.f32.mrf.mxu0
  %v397 = vadd.f32 %v95, %v396
  %v398 = vpop.f32.mrf.mxu0
  %399 = vmatprep.mubr.f32.mxu0 0.0
  %400 = vmatmul.mubr.f32.gmra.mxu0 %v126
  %v401 = vpop.f32.mrf.mxu0
  %v402 = vadd.f32 %v95, %v401
  %v403 = vpop.f32.mrf.mxu0
  %404 = vmatprep.mubr.f32.mxu0 0.0
  %405 = vmatmul.mubr.f32.gmra.mxu0 %v129
  %v406 = vpop.f32.mrf.mxu0
  %v407 = vadd.f32 %v95, %v406
  %v408 = vpop.f32.mrf.mxu0
  %409 = vmatprep.mubr.f32.mxu0 0.0
  %410 = vmatmul.mubr.f32.gmra.mxu0 %v132
  %v411 = vpop.f32.mrf.mxu0
  %v412 = vadd.f32 %v95, %v411
  %v413 = vpop.f32.mrf.mxu0
  %414 = vmatprep.mubr.f32.mxu0 0.0
  %415 = vmatmul.mubr.f32.gmra.mxu0 %v135
  %v416 = vpop.f32.mrf.mxu0
  %v417 = vadd.f32 %v95, %v416
  %v418 = vpop.f32.mrf.mxu0
  %419 = vmatprep.mubr.f32.mxu0 0.0
  %420 = vmatmul.mubr.f32.gmra.mxu0 %v138
  %v421 = vpop.f32.mrf.mxu0
  %v422 = vadd.f32 %v95, %v421
  %v423 = vpop.f32.mrf.mxu0
  %424 = vmatprep.mubr.f32.mxu0 0.0
  %425 = vmatmul.mubr.f32.gmra.mxu0 %v141
  %v426 = vpop.f32.mrf.mxu0
  %v427 = vadd.f32 %v95, %v426
  %v428 = vpop.f32.mrf.mxu0
  %429 = vmatprep.mubr.f32.mxu0 0.0
  %430 = vmatmul.mubr.f32.gmra.mxu0 %v144
  %v431 = vpop.f32.mrf.mxu0
  %v432 = vadd.f32 %v95, %v431
  %v433 = vpop.f32.mrf.mxu0
  %434 = vmatprep.mubr.f32.mxu0 0.0
  %435 = vmatmul.mubr.f32.gmra.mxu0 %v147
  %v436 = vpop.f32.mrf.mxu0
  %v437 = vadd.f32 %v95, %v436
  %v438 = vpop.f32.mrf.mxu0
  %439 = vmatprep.mubr.f32.mxu0 0.0
  %440 = vmatmul.mubr.f32.gmra.mxu0 %v150
  %v441 = vpop.f32.mrf.mxu0
  %v442 = vadd.f32 %v95, %v441
  %v443 = vpop.f32.mrf.mxu0
  %444 = vmatprep.mubr.f32.mxu0 0.0
  %445 = vmatmul.mubr.f32.gmra.mxu0 %v153
  %v446 = vpop.f32.mrf.mxu0
  %v447 = vadd.f32 %v95, %v446
  %v448 = vpop.f32.mrf.mxu0
  %449 = vmatprep.mubr.f32.mxu0 0.0
  %450 = vmatmul.mubr.f32.gmra.mxu0 %v156
  %v451 = vpop.f32.mrf.mxu0
  %v452 = vadd.f32 %v95, %v451
  %v453 = vpop.f32.mrf.mxu0
  %454 = vmatprep.mubr.f32.mxu0 0.0
  %455 = vmatmul.mubr.f32.gmra.mxu0 %v159
  %v456 = vpop.f32.mrf.mxu0
  %v457 = vadd.f32 %v95, %v456
  %v458 = vpop.f32.mrf.mxu0
  %459 = vmatprep.mubr.f32.mxu0 0.0
  %460 = vmatmul.mubr.f32.gmra.mxu0 %v162
  %v461 = vpop.f32.mrf.mxu0
  %v462 = vadd.f32 %v95, %v461
  %v463 = vpop.f32.mrf.mxu0
  %464 = vmatprep.mubr.f32.mxu0 0.0
  %465 = vmatmul.mubr.f32.gmra.mxu0 %v165
  %v466 = vpop.f32.mrf.mxu0
  %v467 = vadd.f32 %v95, %v466
  %v468 = vpop.f32.mrf.mxu0
  %469 = vmatprep.mubr.f32.mxu0 0.0
  %470 = vmatmul.mubr.f32.gmra.mxu0 %v168
  %v471 = vpop.f32.mrf.mxu0
  %v472 = vadd.f32 %v95, %v471
  %v473 = vpop.f32.mrf.mxu0
  %474 = vmatprep.mubr.f32.mxu0 0.0
  %475 = vmatmul.mubr.f32.gmra.mxu0 %v171
  %v476 = vpop.f32.mrf.mxu0
  %v477 = vadd.f32 %v95, %v476
  %v478 = vpop.f32.mrf.mxu0
  %479 = vmatprep.mubr.f32.mxu0 0.0
  %480 = vmatmul.mubr.f32.gmra.mxu0 %v174
  %v481 = vpop.f32.mrf.mxu0
  %v482 = vadd.f32 %v95, %v481
  %v483 = vpop.f32.mrf.mxu0
  %484 = vmatprep.mubr.f32.mxu0 0.0
  %485 = vmatmul.mubr.f32.gmra.mxu0 %v177
  %v486 = vpop.f32.mrf.mxu0
  %v487 = vadd.f32 %v95, %v486
  %v488 = vpop.f32.mrf.mxu0
  %489 = vmatprep.mubr.f32.mxu0 0.0
  %490 = vmatmul.mubr.f32.gmra.mxu0 %v180
  %v491 = vpop.f32.mrf.mxu0
  %v492 = vadd.f32 %v95, %v491
  %v493 = vpop.f32.mrf.mxu0
  %494 = vmatprep.mubr.f32.mxu0 0.0
  %495 = vmatmul.mubr.f32.gmra.mxu0 %v183
  %v496 = vpop.f32.mrf.mxu0
  %v497 = vadd.f32 %v95, %v496
  %v498 = vpop.f32.mrf.mxu0
  %499 = vmatprep.mubr.f32.mxu0 0.0
  %500 = vmatmul.mubr.f32.gmra.mxu0 %v186
  %v501 = vpop.f32.mrf.mxu0
  %v502 = vadd.f32 %v95, %v501
  %v503 = vpop.f32.mrf.mxu0
  %504 = vmatprep.mubr.f32.mxu0 0.0
  %505 = vmatmul.mubr.f32.gmra.mxu0 %v189
  %v506 = vpop.f32.mrf.mxu0
  %v507 = vadd.f32 %v95, %v506
  %v508 = vpop.f32.mrf.mxu0
  %509 = vmatprep.mubr.f32.mxu0 0.0
  %510 = vmatmul.mubr.f32.gmra.mxu0 %v192
  %v511 = vpop.f32.mrf.mxu0
  %v512 = vadd.f32 %v95, %v511
  %v513 = vpop.f32.mrf.mxu0
  %514 = vmatprep.mubr.f32.mxu0 0.0
  %515 = vmatmul.mubr.f32.gmra.mxu0 %v195
  %v516 = vpop.f32.mrf.mxu0
  %v517 = vadd.f32 %v95, %v516
  %v518 = vpop.f32.mrf.mxu0
  %519 = vmatprep.mubr.f32.mxu0 0.0
  %520 = vmatmul.mubr.f32.gmra.mxu0 %v198
  %v521 = vpop.f32.mrf.mxu0
  %v522 = vadd.f32 %v95, %v521
  %v523 = vpop.f32.mrf.mxu0
  %524 = vmatprep.mubr.f32.mxu0 0.0
  %525 = vmatmul.mubr.f32.gmra.mxu0 %v201
  %v526 = vpop.f32.mrf.mxu0
  %v527 = vadd.f32 %v95, %v526
  %v528 = vpop.f32.mrf.mxu0
  %529 = vmatprep.mubr.f32.mxu0 0.0
  %530 = vmatmul.mubr.f32.gmra.mxu0 %v204
  %v531 = vpop.f32.mrf.mxu0
  %v532 = vadd.f32 %v95, %v531
  %v533 = vpop.f32.mrf.mxu0
  %534 = vmatprep.mubr.f32.mxu0 0.0
  %535 = vmatmul.mubr.f32.gmra.mxu0 %v207
  %v536 = vpop.f32.mrf.mxu0
  %v537 = vadd.f32 %v95, %v536
  %v538 = vpop.f32.mrf.mxu0
  %539 = vmatprep.mubr.f32.mxu0 0.0
  %540 = vmatmul.mubr.f32.gmra.mxu0 %v210
  %v541 = vpop.f32.mrf.mxu0
  %v542 = vadd.f32 %v95, %v541
  %v543 = vpop.f32.mrf.mxu0
  %544 = vmatprep.mubr.f32.mxu0 0.0
  %545 = vmatmul.mubr.f32.gmra.mxu0 %v213
  %v546 = vpop.f32.mrf.mxu0
  %v547 = vadd.f32 %v95, %v546
  %v548 = vpop.f32.mrf.mxu0
  %549 = vmatprep.mubr.f32.mxu0 0.0
  %550 = vmatmul.mubr.f32.gmra.mxu0 %v216
  %v551 = vpop.f32.mrf.mxu0
  %v552 = vadd.f32 %v95, %v551
  %v553 = vpop.f32.mrf.mxu0
  %554 = vmatprep.mubr.f32.mxu0 0.0
  %555 = vmatmul.mubr.f32.gmra.mxu0 %v219
  %v556 = vpop.f32.mrf.mxu0
  %v557 = vadd.f32 %v95, %v556
  %v558 = vpop.f32.mrf.mxu0
  %559 = vmatprep.mubr.f32.mxu0 0.0
  %560 = vmatmul.mubr.f32.gmra.mxu0 %v222
  %v561 = vpop.f32.mrf.mxu0
  %v562 = vadd.f32 %v95, %v561
  %v563 = vpop.f32.mrf.mxu0
  %564 = vmatprep.mubr.f32.mxu0 0.0
  %565 = vmatmul.mubr.f32.gmra.mxu0 %v225
  %v566 = vpop.f32.mrf.mxu0
  %v567 = vadd.f32 %v95, %v566
  %v568 = vpop.f32.mrf.mxu0
  %569 = vmatprep.mubr.f32.mxu0 0.0
  %570 = vmatmul.mubr.f32.gmra.mxu0 %v228
  %v571 = vpop.f32.mrf.mxu0
  %v572 = vadd.f32 %v95, %v571
  %v573 = vpop.f32.mrf.mxu0
  %574 = vmatprep.mubr.f32.mxu0 0.0
  %575 = vmatmul.mubr.f32.gmra.mxu0 %v231
  %v576 = vpop.f32.mrf.mxu0
  %v577 = vadd.f32 %v95, %v576
  %v578 = vpop.f32.mrf.mxu0
  %579 = vmatprep.mubr.f32.mxu0 0.0
  %580 = vmatmul.mubr.f32.gmra.mxu0 %v234
  %v581 = vpop.f32.mrf.mxu0
  %v582 = vadd.f32 %v95, %v581
  %v583 = vpop.f32.mrf.mxu0
  %584 = vmatprep.mubr.f32.mxu0 0.0
  %585 = vmatmul.mubr.f32.gmra.mxu0 %v237
  %v586 = vpop.f32.mrf.mxu0
  %v587 = vadd.f32 %v95, %v586
  %v588 = vpop.f32.mrf.mxu0
  %589 = vmatprep.mubr.f32.mxu0 0.0
  %590 = vmatmul.mubr.f32.gmra.mxu0 %v240
  %v591 = vpop.f32.mrf.mxu0
  %v592 = vadd.f32 %v95, %v591
  %v593 = vpop.f32.mrf.mxu0
  %594 = vmatprep.mubr.f32.mxu0 0.0
  %595 = vmatmul.mubr.f32.gmra.mxu0 %v243
  %v596 = vpop.f32.mrf.mxu0
  %v597 = vadd.f32 %v95, %v596
  %v598 = vpop.f32.mrf.mxu0
  %599 = vmatprep.mubr.f32.mxu0 0.0
  %600 = vmatmul.mubr.f32.gmra.mxu0 %v246
  %v601 = vpop.f32.mrf.mxu0
  %v602 = vadd.f32 %v95, %v601
  %v603 = vpop.f32.mrf.mxu0
  %604 = vmatprep.mubr.f32.mxu0 0.0
  %605 = vmatmul.mubr.f32.gmra.mxu0 %v249
  %v606 = vpop.f32.mrf.mxu0
  %v607 = vadd.f32 %v95, %v606
  %v608 = vpop.f32.mrf.mxu0
  %609 = vmatprep.mubr.f32.mxu0 0.0
  %610 = vmatmul.mubr.f32.gmra.mxu0 %v252
  %v611 = vpop.f32.mrf.mxu0
  %v612 = vadd.f32 %v95, %v611
  %v613 = vpop.f32.mrf.mxu0
  %614 = vmatprep.mubr.f32.mxu0 0.0
  %615 = vmatmul.mubr.f32.gmra.mxu0 %v255
  %v616 = vpop.f32.mrf.mxu0
  %v617 = vadd.f32 %v95, %v616
  %v618 = vpop.f32.mrf.mxu0
  %619 = vmatprep.mubr.f32.mxu0 0.0
  %620 = vmatmul.mubr.f32.gmra.mxu0 %v258
  %v621 = vpop.f32.mrf.mxu0
  %v622 = vadd.f32 %v95, %v621
  %v623 = vpop.f32.mrf.mxu0
  %624 = vmatprep.mubr.f32.mxu0 0.0
  %625 = vmatmul.mubr.f32.gmra.mxu0 %v261
  %v626 = vpop.f32.mrf.mxu0
  %v627 = vadd.f32 %v95, %v626
  %v628 = vpop.f32.mrf.mxu0
  %629 = vmatprep.mubr.f32.mxu0 0.0
  %630 = vmatmul.mubr.f32.gmra.mxu0 %v264
  %v631 = vpop.f32.mrf.mxu0
  %v632 = vadd.f32 %v95, %v631
  %v633 = vpop.f32.mrf.mxu0
  %634 = vmatprep.mubr.f32.mxu0 0.0
  %635 = vmatmul.mubr.f32.gmra.mxu0 %v267
  %v636 = vpop.f32.mrf.mxu0
  %v637 = vadd.f32 %v95, %v636
  %v638 = vpop.f32.mrf.mxu0
  %639 = vmatprep.mubr.f32.mxu0 0.0
  %640 = vmatmul.mubr.f32.gmra.mxu0 %v270
  %v641 = vpop.f32.mrf.mxu0
  %v642 = vadd.f32 %v95, %v641
  %v643 = vpop.f32.mrf.mxu0
  %644 = vmatprep.mubr.f32.mxu0 0.0
  %645 = vmatmul.mubr.f32.gmra.mxu0 %v273
  %v646 = vpop.f32.mrf.mxu0
  %v647 = vadd.f32 %v95, %v646
  %v648 = vpop.f32.mrf.mxu0
  %649 = vmatprep.mubr.f32.mxu0 0.0
  %650 = vmatmul.mubr.f32.gmra.mxu0 %v276
  %v651 = vpop.f32.mrf.mxu0
  %v652 = vadd.f32 %v95, %v651
  %v653 = vpop.f32.mrf.mxu0
  %654 = vmatprep.mubr.f32.mxu0 0.0
  %655 = vmatmul.mubr.f32.gmra.mxu0 %v279
  %v656 = vpop.f32.mrf.mxu0
  %v657 = vadd.f32 %v95, %v656
  %v658 = vpop.f32.mrf.mxu0
  %659 = vmatprep.mubr.f32.mxu0 0.0
  %660 = vmatmul.mubr.f32.gmra.mxu0 %v282
  %v661 = vpop.f32.mrf.mxu0
  %v662 = vadd.f32 %v95, %v661
  %v663 = vpop.f32.mrf.mxu0
  %664 = vmatprep.mubr.f32.mxu0 0.0
  %665 = vmatmul.mubr.f32.gmra.mxu0 %v285
  %v666 = vpop.f32.mrf.mxu0
  %v667 = vadd.f32 %v95, %v666
  %v668 = vpop.f32.mrf.mxu0
  %669 = vmatprep.mubr.f32.mxu0 0.0
  %670 = vmatmul.mubr.f32.gmra.mxu0 %v288
  %v671 = vpop.f32.mrf.mxu0
  %v672 = vadd.f32 %v95, %v671
  %v673 = vpop.f32.mrf.mxu0
  %674 = vdwg.mxu0
  %v675 = vld [vmem:[%s3] sm:$0x1]
  %v676 = vld [vmem:[%s4] sm:$0x1]
  %vm677 = vcmask 64512
  %v678 = vsel %vm677, %v357, 0.0
  %679 = vadd.xlane.f32.xlu0 %v678
  %v680 = vpop.xlane.xlu0 %679
  %v681 = vsel %vm677, %v362, 0.0
  %682 = vadd.xlane.f32.xlu0 %v681
  %v683 = vpop.xlane.xlu0 %682
  %v684 = vsel %vm677, %v367, 0.0
  %685 = vadd.xlane.f32.xlu0 %v684
  %v686 = vpop.xlane.xlu0 %685
  %v687 = vsel %vm677, %v372, 0.0
  %688 = vadd.xlane.f32.xlu0 %v687
  %v689 = vpop.xlane.xlu0 %688
  %v690 = vsel %vm677, %v377, 0.0
  %691 = vadd.xlane.f32.xlu0 %v690
  %v692 = vpop.xlane.xlu0 %691
  %v693 = vsel %vm677, %v382, 0.0
  %694 = vadd.xlane.f32.xlu0 %v693
  %v695 = vpop.xlane.xlu0 %694
  %v696 = vsel %vm677, %v387, 0.0
  %697 = vadd.xlane.f32.xlu0 %v696
  %v698 = vpop.xlane.xlu0 %697
  %v699 = vsel %vm677, %v392, 0.0
  %700 = vadd.xlane.f32.xlu0 %v699
  %v701 = vpop.xlane.xlu0 %700
  %v702 = vsel %vm677, %v397, 0.0
  %703 = vadd.xlane.f32.xlu0 %v702
  %v704 = vpop.xlane.xlu0 %703
  %v705 = vsel %vm677, %v402, 0.0
  %706 = vadd.xlane.f32.xlu0 %v705
  %v707 = vpop.xlane.xlu0 %706
  %v708 = vsel %vm677, %v407, 0.0
  %709 = vadd.xlane.f32.xlu0 %v708
  %v710 = vpop.xlane.xlu0 %709
  %v711 = vsel %vm677, %v412, 0.0
  %712 = vadd.xlane.f32.xlu0 %v711
  %v713 = vpop.xlane.xlu0 %712
  %v714 = vsel %vm677, %v417, 0.0
  %715 = vadd.xlane.f32.xlu0 %v714
  %v716 = vpop.xlane.xlu0 %715
  %v717 = vsel %vm677, %v422, 0.0
  %718 = vadd.xlane.f32.xlu0 %v717
  %v719 = vpop.xlane.xlu0 %718
  %v720 = vsel %vm677, %v427, 0.0
  %721 = vadd.xlane.f32.xlu0 %v720
  %v722 = vpop.xlane.xlu0 %721
  %v723 = vsel %vm677, %v432, 0.0
  %724 = vadd.xlane.f32.xlu0 %v723
  %v725 = vpop.xlane.xlu0 %724
  %v726 = vsel %vm677, %v437, 0.0
  %727 = vadd.xlane.f32.xlu0 %v726
  %v728 = vpop.xlane.xlu0 %727
  %v729 = vsel %vm677, %v442, 0.0
  %730 = vadd.xlane.f32.xlu0 %v729
  %v731 = vpop.xlane.xlu0 %730
  %v732 = vsel %vm677, %v447, 0.0
  %733 = vadd.xlane.f32.xlu0 %v732
  %v734 = vpop.xlane.xlu0 %733
  %v735 = vsel %vm677, %v452, 0.0
  %736 = vadd.xlane.f32.xlu0 %v735
  %v737 = vpop.xlane.xlu0 %736
  %v738 = vsel %vm677, %v457, 0.0
  %739 = vadd.xlane.f32.xlu0 %v738
  %v740 = vpop.xlane.xlu0 %739
  %v741 = vsel %vm677, %v462, 0.0
  %742 = vadd.xlane.f32.xlu0 %v741
  %v743 = vpop.xlane.xlu0 %742
  %v744 = vsel %vm677, %v467, 0.0
  %745 = vadd.xlane.f32.xlu0 %v744
  %v746 = vpop.xlane.xlu0 %745
  %v747 = vsel %vm677, %v472, 0.0
  %748 = vadd.xlane.f32.xlu0 %v747
  %v749 = vpop.xlane.xlu0 %748
  %v750 = vsel %vm677, %v477, 0.0
  %751 = vadd.xlane.f32.xlu0 %v750
  %v752 = vpop.xlane.xlu0 %751
  %v753 = vsel %vm677, %v482, 0.0
  %754 = vadd.xlane.f32.xlu0 %v753
  %v755 = vpop.xlane.xlu0 %754
  %v756 = vsel %vm677, %v487, 0.0
  %757 = vadd.xlane.f32.xlu0 %v756
  %v758 = vpop.xlane.xlu0 %757
  %v759 = vsel %vm677, %v492, 0.0
  %760 = vadd.xlane.f32.xlu0 %v759
  %v761 = vpop.xlane.xlu0 %760
  %v762 = vsel %vm677, %v497, 0.0
  %763 = vadd.xlane.f32.xlu0 %v762
  %v764 = vpop.xlane.xlu0 %763
  %v765 = vsel %vm677, %v502, 0.0
  %766 = vadd.xlane.f32.xlu0 %v765
  %v767 = vpop.xlane.xlu0 %766
  %v768 = vsel %vm677, %v507, 0.0
  %769 = vadd.xlane.f32.xlu0 %v768
  %v770 = vpop.xlane.xlu0 %769
  %v771 = vsel %vm677, %v512, 0.0
  %772 = vadd.xlane.f32.xlu0 %v771
  %v773 = vpop.xlane.xlu0 %772
  %v774 = vsel %vm677, %v517, 0.0
  %775 = vadd.xlane.f32.xlu0 %v774
  %v776 = vpop.xlane.xlu0 %775
  %v777 = vsel %vm677, %v522, 0.0
  %778 = vadd.xlane.f32.xlu0 %v777
  %v779 = vpop.xlane.xlu0 %778
  %v780 = vsel %vm677, %v527, 0.0
  %781 = vadd.xlane.f32.xlu0 %v780
  %v782 = vpop.xlane.xlu0 %781
  %v783 = vsel %vm677, %v532, 0.0
  %784 = vadd.xlane.f32.xlu0 %v783
  %v785 = vpop.xlane.xlu0 %784
  %v786 = vsel %vm677, %v537, 0.0
  %787 = vadd.xlane.f32.xlu0 %v786
  %v788 = vpop.xlane.xlu0 %787
  %v789 = vsel %vm677, %v542, 0.0
  %790 = vadd.xlane.f32.xlu0 %v789
  %v791 = vpop.xlane.xlu0 %790
  %v792 = vsel %vm677, %v547, 0.0
  %793 = vadd.xlane.f32.xlu0 %v792
  %v794 = vpop.xlane.xlu0 %793
  %v795 = vsel %vm677, %v552, 0.0
  %796 = vadd.xlane.f32.xlu0 %v795
  %v797 = vpop.xlane.xlu0 %796
  %v798 = vsel %vm677, %v557, 0.0
  %799 = vadd.xlane.f32.xlu0 %v798
  %v800 = vpop.xlane.xlu0 %799
  %v801 = vsel %vm677, %v562, 0.0
  %802 = vadd.xlane.f32.xlu0 %v801
  %v803 = vpop.xlane.xlu0 %802
  %v804 = vsel %vm677, %v567, 0.0
  %805 = vadd.xlane.f32.xlu0 %v804
  %v806 = vpop.xlane.xlu0 %805
  %v807 = vsel %vm677, %v572, 0.0
  %808 = vadd.xlane.f32.xlu0 %v807
  %v809 = vpop.xlane.xlu0 %808
  %v810 = vsel %vm677, %v577, 0.0
  %811 = vadd.xlane.f32.xlu0 %v810
  %v812 = vpop.xlane.xlu0 %811
  %v813 = vsel %vm677, %v582, 0.0
  %814 = vadd.xlane.f32.xlu0 %v813
  %v815 = vpop.xlane.xlu0 %814
  %v816 = vsel %vm677, %v587, 0.0
  %817 = vadd.xlane.f32.xlu0 %v816
  %v818 = vpop.xlane.xlu0 %817
  %v819 = vsel %vm677, %v592, 0.0
  %820 = vadd.xlane.f32.xlu0 %v819
  %v821 = vpop.xlane.xlu0 %820
  %v822 = vsel %vm677, %v597, 0.0
  %823 = vadd.xlane.f32.xlu0 %v822
  %v824 = vpop.xlane.xlu0 %823
  %v825 = vsel %vm677, %v602, 0.0
  %826 = vadd.xlane.f32.xlu0 %v825
  %v827 = vpop.xlane.xlu0 %826
  %v828 = vsel %vm677, %v607, 0.0
  %829 = vadd.xlane.f32.xlu0 %v828
  %v830 = vpop.xlane.xlu0 %829
  %v831 = vsel %vm677, %v612, 0.0
  %832 = vadd.xlane.f32.xlu0 %v831
  %v833 = vpop.xlane.xlu0 %832
  %v834 = vsel %vm677, %v617, 0.0
  %835 = vadd.xlane.f32.xlu0 %v834
  %v836 = vpop.xlane.xlu0 %835
  %v837 = vsel %vm677, %v622, 0.0
  %838 = vadd.xlane.f32.xlu0 %v837
  %v839 = vpop.xlane.xlu0 %838
  %v840 = vsel %vm677, %v627, 0.0
  %841 = vadd.xlane.f32.xlu0 %v840
  %v842 = vpop.xlane.xlu0 %841
  %v843 = vsel %vm677, %v632, 0.0
  %844 = vadd.xlane.f32.xlu0 %v843
  %v845 = vpop.xlane.xlu0 %844
  %v846 = vsel %vm677, %v637, 0.0
  %847 = vadd.xlane.f32.xlu0 %v846
  %v848 = vpop.xlane.xlu0 %847
  %v849 = vsel %vm677, %v642, 0.0
  %850 = vadd.xlane.f32.xlu0 %v849
  %v851 = vpop.xlane.xlu0 %850
  %v852 = vsel %vm677, %v647, 0.0
  %853 = vadd.xlane.f32.xlu0 %v852
  %v854 = vpop.xlane.xlu0 %853
  %v855 = vsel %vm677, %v652, 0.0
  %856 = vadd.xlane.f32.xlu0 %v855
  %v857 = vpop.xlane.xlu0 %856
  %v858 = vsel %vm677, %v657, 0.0
  %859 = vadd.xlane.f32.xlu0 %v858
  %v860 = vpop.xlane.xlu0 %859
  %v861 = vsel %vm677, %v662, 0.0
  %862 = vadd.xlane.f32.xlu0 %v861
  %v863 = vpop.xlane.xlu0 %862
  %v864 = vsel %vm677, %v667, 0.0
  %865 = vadd.xlane.f32.xlu0 %v864
  %v866 = vpop.xlane.xlu0 %865
  %v867 = vsel %vm677, %v672, 0.0
  %868 = vadd.xlane.f32.xlu0 %v867
  %v869 = vpop.xlane.xlu0 %868
  %v870 = vrcp.pop 8.0
  %v871 = vmul.f32 %v680, %v870
  %v872 = vmul.f32 %v683, %v870
  %v873 = vmul.f32 %v686, %v870
  %v874 = vmul.f32 %v689, %v870
  %v875 = vmul.f32 %v692, %v870
  %v876 = vmul.f32 %v695, %v870
  %v877 = vmul.f32 %v698, %v870
  %v878 = vmul.f32 %v701, %v870
  %v879 = vmul.f32 %v704, %v870
  %v880 = vmul.f32 %v707, %v870
  %v881 = vmul.f32 %v710, %v870
  %v882 = vmul.f32 %v713, %v870
  %v883 = vmul.f32 %v716, %v870
  %v884 = vmul.f32 %v719, %v870
  %v885 = vmul.f32 %v722, %v870
  %v886 = vmul.f32 %v725, %v870
  %v887 = vmul.f32 %v728, %v870
  %v888 = vmul.f32 %v731, %v870
  %v889 = vmul.f32 %v734, %v870
  %v890 = vmul.f32 %v737, %v870
  %v891 = vmul.f32 %v740, %v870
  %v892 = vmul.f32 %v743, %v870
  %v893 = vmul.f32 %v746, %v870
  %v894 = vmul.f32 %v749, %v870
  %v895 = vmul.f32 %v752, %v870
  %v896 = vmul.f32 %v755, %v870
  %v897 = vmul.f32 %v758, %v870
  %v898 = vmul.f32 %v761, %v870
  %v899 = vmul.f32 %v764, %v870
  %v900 = vmul.f32 %v767, %v870
  %v901 = vmul.f32 %v770, %v870
  %v902 = vmul.f32 %v773, %v870
  %v903 = vmul.f32 %v776, %v870
  %v904 = vmul.f32 %v779, %v870
  %v905 = vmul.f32 %v782, %v870
  %v906 = vmul.f32 %v785, %v870
  %v907 = vmul.f32 %v788, %v870
  %v908 = vmul.f32 %v791, %v870
  %v909 = vmul.f32 %v794, %v870
  %v910 = vmul.f32 %v797, %v870
  %v911 = vmul.f32 %v800, %v870
  %v912 = vmul.f32 %v803, %v870
  %v913 = vmul.f32 %v806, %v870
  %v914 = vmul.f32 %v809, %v870
  %v915 = vmul.f32 %v812, %v870
  %v916 = vmul.f32 %v815, %v870
  %v917 = vmul.f32 %v818, %v870
  %v918 = vmul.f32 %v821, %v870
  %v919 = vmul.f32 %v824, %v870
  %v920 = vmul.f32 %v827, %v870
  %v921 = vmul.f32 %v830, %v870
  %v922 = vmul.f32 %v833, %v870
  %v923 = vmul.f32 %v836, %v870
  %v924 = vmul.f32 %v839, %v870
  %v925 = vmul.f32 %v842, %v870
  %v926 = vmul.f32 %v845, %v870
  %v927 = vmul.f32 %v848, %v870
  %v928 = vmul.f32 %v851, %v870
  %v929 = vmul.f32 %v854, %v870
  %v930 = vmul.f32 %v857, %v870
  %v931 = vmul.f32 %v860, %v870
  %v932 = vmul.f32 %v863, %v870
  %v933 = vmul.f32 %v866, %v870
  %v934 = vmul.f32 %v869, %v870
  %v935 = vsub.f32 %v357, %v871
  %v936 = vsub.f32 %v362, %v872
  %v937 = vsub.f32 %v367, %v873
  %v938 = vsub.f32 %v372, %v874
  %v939 = vsub.f32 %v377, %v875
  %v940 = vsub.f32 %v382, %v876
  %v941 = vsub.f32 %v387, %v877
  %v942 = vsub.f32 %v392, %v878
  %v943 = vsub.f32 %v397, %v879
  %v944 = vsub.f32 %v402, %v880
  %v945 = vsub.f32 %v407, %v881
  %v946 = vsub.f32 %v412, %v882
  %v947 = vsub.f32 %v417, %v883
  %v948 = vsub.f32 %v422, %v884
  %v949 = vsub.f32 %v427, %v885
  %v950 = vsub.f32 %v432, %v886
  %v951 = vsub.f32 %v437, %v887
  %v952 = vsub.f32 %v442, %v888
  %v953 = vsub.f32 %v447, %v889
  %v954 = vsub.f32 %v452, %v890
  %v955 = vsub.f32 %v457, %v891
  %v956 = vsub.f32 %v462, %v892
  %v957 = vsub.f32 %v467, %v893
  %v958 = vsub.f32 %v472, %v894
  %v959 = vsub.f32 %v477, %v895
  %v960 = vsub.f32 %v482, %v896
  %v961 = vsub.f32 %v487, %v897
  %v962 = vsub.f32 %v492, %v898
  %v963 = vsub.f32 %v497, %v899
  %v964 = vsub.f32 %v502, %v900
  %v965 = vsub.f32 %v507, %v901
  %v966 = vsub.f32 %v512, %v902
  %v967 = vsub.f32 %v517, %v903
  %v968 = vsub.f32 %v522, %v904
  %v969 = vsub.f32 %v527, %v905
  %v970 = vsub.f32 %v532, %v906
  %v971 = vsub.f32 %v537, %v907
  %v972 = vsub.f32 %v542, %v908
  %v973 = vsub.f32 %v547, %v909
  %v974 = vsub.f32 %v552, %v910
  %v975 = vsub.f32 %v557, %v911
  %v976 = vsub.f32 %v562, %v912
  %v977 = vsub.f32 %v567, %v913
  %v978 = vsub.f32 %v572, %v914
  %v979 = vsub.f32 %v577, %v915
  %v980 = vsub.f32 %v582, %v916
  %v981 = vsub.f32 %v587, %v917
  %v982 = vsub.f32 %v592, %v918
  %v983 = vsub.f32 %v597, %v919
  %v984 = vsub.f32 %v602, %v920
  %v985 = vsub.f32 %v607, %v921
  %v986 = vsub.f32 %v612, %v922
  %v987 = vsub.f32 %v617, %v923
  %v988 = vsub.f32 %v622, %v924
  %v989 = vsub.f32 %v627, %v925
  %v990 = vsub.f32 %v632, %v926
  %v991 = vsub.f32 %v637, %v927
  %v992 = vsub.f32 %v642, %v928
  %v993 = vsub.f32 %v647, %v929
  %v994 = vsub.f32 %v652, %v930
  %v995 = vsub.f32 %v657, %v931
  %v996 = vsub.f32 %v662, %v932
  %v997 = vsub.f32 %v667, %v933
  %v998 = vsub.f32 %v672, %v934
  %v999 = vmul.f32 %v935, %v935
  %v1000 = vmul.f32 %v936, %v936
  %v1001 = vmul.f32 %v937, %v937
  %v1002 = vmul.f32 %v938, %v938
  %v1003 = vmul.f32 %v939, %v939
  %v1004 = vmul.f32 %v940, %v940
  %v1005 = vmul.f32 %v941, %v941
  %v1006 = vmul.f32 %v942, %v942
  %v1007 = vmul.f32 %v943, %v943
  %v1008 = vmul.f32 %v944, %v944
  %v1009 = vmul.f32 %v945, %v945
  %v1010 = vmul.f32 %v946, %v946
  %v1011 = vmul.f32 %v947, %v947
  %v1012 = vmul.f32 %v948, %v948
  %v1013 = vmul.f32 %v949, %v949
  %v1014 = vmul.f32 %v950, %v950
  %v1015 = vmul.f32 %v951, %v951
  %v1016 = vmul.f32 %v952, %v952
  %v1017 = vmul.f32 %v953, %v953
  %v1018 = vmul.f32 %v954, %v954
  %v1019 = vmul.f32 %v955, %v955
  %v1020 = vmul.f32 %v956, %v956
  %v1021 = vmul.f32 %v957, %v957
  %v1022 = vmul.f32 %v958, %v958
  %v1023 = vmul.f32 %v959, %v959
  %v1024 = vmul.f32 %v960, %v960
  %v1025 = vmul.f32 %v961, %v961
  %v1026 = vmul.f32 %v962, %v962
  %v1027 = vmul.f32 %v963, %v963
  %v1028 = vmul.f32 %v964, %v964
  %v1029 = vmul.f32 %v965, %v965
  %v1030 = vmul.f32 %v966, %v966
  %v1031 = vmul.f32 %v967, %v967
  %v1032 = vmul.f32 %v968, %v968
  %v1033 = vmul.f32 %v969, %v969
  %v1034 = vmul.f32 %v970, %v970
  %v1035 = vmul.f32 %v971, %v971
  %v1036 = vmul.f32 %v972, %v972
  %v1037 = vmul.f32 %v973, %v973
  %v1038 = vmul.f32 %v974, %v974
  %v1039 = vmul.f32 %v975, %v975
  %v1040 = vmul.f32 %v976, %v976
  %v1041 = vmul.f32 %v977, %v977
  %v1042 = vmul.f32 %v978, %v978
  %v1043 = vmul.f32 %v979, %v979
  %v1044 = vmul.f32 %v980, %v980
  %v1045 = vmul.f32 %v981, %v981
  %v1046 = vmul.f32 %v982, %v982
  %v1047 = vmul.f32 %v983, %v983
  %v1048 = vmul.f32 %v984, %v984
  %v1049 = vmul.f32 %v985, %v985
  %v1050 = vmul.f32 %v986, %v986
  %v1051 = vmul.f32 %v987, %v987
  %v1052 = vmul.f32 %v988, %v988
  %v1053 = vmul.f32 %v989, %v989
  %v1054 = vmul.f32 %v990, %v990
  %v1055 = vmul.f32 %v991, %v991
  %v1056 = vmul.f32 %v992, %v992
  %v1057 = vmul.f32 %v993, %v993
  %v1058 = vmul.f32 %v994, %v994
  %v1059 = vmul.f32 %v995, %v995
  %v1060 = vmul.f32 %v996, %v996
  %v1061 = vmul.f32 %v997, %v997
  %v1062 = vmul.f32 %v998, %v998
  %v1063 = vsel %vm677, %v999, 0.0
  %1064 = vadd.xlane.f32.xlu0 %v1063
  %v1065 = vpop.xlane.xlu0 %1064
  %v1066 = vsel %vm677, %v1000, 0.0
  %1067 = vadd.xlane.f32.xlu0 %v1066
  %v1068 = vpop.xlane.xlu0 %1067
  %v1069 = vsel %vm677, %v1001, 0.0
  %1070 = vadd.xlane.f32.xlu0 %v1069
  %v1071 = vpop.xlane.xlu0 %1070
  %v1072 = vsel %vm677, %v1002, 0.0
  %1073 = vadd.xlane.f32.xlu0 %v1072
  %v1074 = vpop.xlane.xlu0 %1073
  %v1075 = vsel %vm677, %v1003, 0.0
  %1076 = vadd.xlane.f32.xlu0 %v1075
  %v1077 = vpop.xlane.xlu0 %1076
  %v1078 = vsel %vm677, %v1004, 0.0
  %1079 = vadd.xlane.f32.xlu0 %v1078
  %v1080 = vpop.xlane.xlu0 %1079
  %v1081 = vsel %vm677, %v1005, 0.0
  %1082 = vadd.xlane.f32.xlu0 %v1081
  %v1083 = vpop.xlane.xlu0 %1082
  %v1084 = vsel %vm677, %v1006, 0.0
  %1085 = vadd.xlane.f32.xlu0 %v1084
  %v1086 = vpop.xlane.xlu0 %1085
  %v1087 = vsel %vm677, %v1007, 0.0
  %1088 = vadd.xlane.f32.xlu0 %v1087
  %v1089 = vpop.xlane.xlu0 %1088
  %v1090 = vsel %vm677, %v1008, 0.0
  %1091 = vadd.xlane.f32.xlu0 %v1090
  %v1092 = vpop.xlane.xlu0 %1091
  %v1093 = vsel %vm677, %v1009, 0.0
  %1094 = vadd.xlane.f32.xlu0 %v1093
  %v1095 = vpop.xlane.xlu0 %1094
  %v1096 = vsel %vm677, %v1010, 0.0
  %1097 = vadd.xlane.f32.xlu0 %v1096
  %v1098 = vpop.xlane.xlu0 %1097
  %v1099 = vsel %vm677, %v1011, 0.0
  %1100 = vadd.xlane.f32.xlu0 %v1099
  %v1101 = vpop.xlane.xlu0 %1100
  %v1102 = vsel %vm677, %v1012, 0.0
  %1103 = vadd.xlane.f32.xlu0 %v1102
  %v1104 = vpop.xlane.xlu0 %1103
  %v1105 = vsel %vm677, %v1013, 0.0
  %1106 = vadd.xlane.f32.xlu0 %v1105
  %v1107 = vpop.xlane.xlu0 %1106
  %v1108 = vsel %vm677, %v1014, 0.0
  %1109 = vadd.xlane.f32.xlu0 %v1108
  %v1110 = vpop.xlane.xlu0 %1109
  %v1111 = vsel %vm677, %v1015, 0.0
  %1112 = vadd.xlane.f32.xlu0 %v1111
  %v1113 = vpop.xlane.xlu0 %1112
  %v1114 = vsel %vm677, %v1016, 0.0
  %1115 = vadd.xlane.f32.xlu0 %v1114
  %v1116 = vpop.xlane.xlu0 %1115
  %v1117 = vsel %vm677, %v1017, 0.0
  %1118 = vadd.xlane.f32.xlu0 %v1117
  %v1119 = vpop.xlane.xlu0 %1118
  %v1120 = vsel %vm677, %v1018, 0.0
  %1121 = vadd.xlane.f32.xlu0 %v1120
  %v1122 = vpop.xlane.xlu0 %1121
  %v1123 = vsel %vm677, %v1019, 0.0
  %1124 = vadd.xlane.f32.xlu0 %v1123
  %v1125 = vpop.xlane.xlu0 %1124
  %v1126 = vsel %vm677, %v1020, 0.0
  %1127 = vadd.xlane.f32.xlu0 %v1126
  %v1128 = vpop.xlane.xlu0 %1127
  %v1129 = vsel %vm677, %v1021, 0.0
  %1130 = vadd.xlane.f32.xlu0 %v1129
  %v1131 = vpop.xlane.xlu0 %1130
  %v1132 = vsel %vm677, %v1022, 0.0
  %1133 = vadd.xlane.f32.xlu0 %v1132
  %v1134 = vpop.xlane.xlu0 %1133
  %v1135 = vsel %vm677, %v1023, 0.0
  %1136 = vadd.xlane.f32.xlu0 %v1135
  %v1137 = vpop.xlane.xlu0 %1136
  %v1138 = vsel %vm677, %v1024, 0.0
  %1139 = vadd.xlane.f32.xlu0 %v1138
  %v1140 = vpop.xlane.xlu0 %1139
  %v1141 = vsel %vm677, %v1025, 0.0
  %1142 = vadd.xlane.f32.xlu0 %v1141
  %v1143 = vpop.xlane.xlu0 %1142
  %v1144 = vsel %vm677, %v1026, 0.0
  %1145 = vadd.xlane.f32.xlu0 %v1144
  %v1146 = vpop.xlane.xlu0 %1145
  %v1147 = vsel %vm677, %v1027, 0.0
  %1148 = vadd.xlane.f32.xlu0 %v1147
  %v1149 = vpop.xlane.xlu0 %1148
  %v1150 = vsel %vm677, %v1028, 0.0
  %1151 = vadd.xlane.f32.xlu0 %v1150
  %v1152 = vpop.xlane.xlu0 %1151
  %v1153 = vsel %vm677, %v1029, 0.0
  %1154 = vadd.xlane.f32.xlu0 %v1153
  %v1155 = vpop.xlane.xlu0 %1154
  %v1156 = vsel %vm677, %v1030, 0.0
  %1157 = vadd.xlane.f32.xlu0 %v1156
  %v1158 = vpop.xlane.xlu0 %1157
  %v1159 = vsel %vm677, %v1031, 0.0
  %1160 = vadd.xlane.f32.xlu0 %v1159
  %v1161 = vpop.xlane.xlu0 %1160
  %v1162 = vsel %vm677, %v1032, 0.0
  %1163 = vadd.xlane.f32.xlu0 %v1162
  %v1164 = vpop.xlane.xlu0 %1163
  %v1165 = vsel %vm677, %v1033, 0.0
  %1166 = vadd.xlane.f32.xlu0 %v1165
  %v1167 = vpop.xlane.xlu0 %1166
  %v1168 = vsel %vm677, %v1034, 0.0
  %1169 = vadd.xlane.f32.xlu0 %v1168
  %v1170 = vpop.xlane.xlu0 %1169
  %v1171 = vsel %vm677, %v1035, 0.0
  %1172 = vadd.xlane.f32.xlu0 %v1171
  %v1173 = vpop.xlane.xlu0 %1172
  %v1174 = vsel %vm677, %v1036, 0.0
  %1175 = vadd.xlane.f32.xlu0 %v1174
  %v1176 = vpop.xlane.xlu0 %1175
  %v1177 = vsel %vm677, %v1037, 0.0
  %1178 = vadd.xlane.f32.xlu0 %v1177
  %v1179 = vpop.xlane.xlu0 %1178
  %v1180 = vsel %vm677, %v1038, 0.0
  %1181 = vadd.xlane.f32.xlu0 %v1180
  %v1182 = vpop.xlane.xlu0 %1181
  %v1183 = vsel %vm677, %v1039, 0.0
  %1184 = vadd.xlane.f32.xlu0 %v1183
  %v1185 = vpop.xlane.xlu0 %1184
  %v1186 = vsel %vm677, %v1040, 0.0
  %1187 = vadd.xlane.f32.xlu0 %v1186
  %v1188 = vpop.xlane.xlu0 %1187
  %v1189 = vsel %vm677, %v1041, 0.0
  %1190 = vadd.xlane.f32.xlu0 %v1189
  %v1191 = vpop.xlane.xlu0 %1190
  %v1192 = vsel %vm677, %v1042, 0.0
  %1193 = vadd.xlane.f32.xlu0 %v1192
  %v1194 = vpop.xlane.xlu0 %1193
  %v1195 = vsel %vm677, %v1043, 0.0
  %1196 = vadd.xlane.f32.xlu0 %v1195
  %v1197 = vpop.xlane.xlu0 %1196
  %v1198 = vsel %vm677, %v1044, 0.0
  %1199 = vadd.xlane.f32.xlu0 %v1198
  %v1200 = vpop.xlane.xlu0 %1199
  %v1201 = vsel %vm677, %v1045, 0.0
  %1202 = vadd.xlane.f32.xlu0 %v1201
  %v1203 = vpop.xlane.xlu0 %1202
  %v1204 = vsel %vm677, %v1046, 0.0
  %1205 = vadd.xlane.f32.xlu0 %v1204
  %v1206 = vpop.xlane.xlu0 %1205
  %v1207 = vsel %vm677, %v1047, 0.0
  %1208 = vadd.xlane.f32.xlu0 %v1207
  %v1209 = vpop.xlane.xlu0 %1208
  %v1210 = vsel %vm677, %v1048, 0.0
  %1211 = vadd.xlane.f32.xlu0 %v1210
  %v1212 = vpop.xlane.xlu0 %1211
  %v1213 = vsel %vm677, %v1049, 0.0
  %1214 = vadd.xlane.f32.xlu0 %v1213
  %v1215 = vpop.xlane.xlu0 %1214
  %v1216 = vsel %vm677, %v1050, 0.0
  %1217 = vadd.xlane.f32.xlu0 %v1216
  %v1218 = vpop.xlane.xlu0 %1217
  %v1219 = vsel %vm677, %v1051, 0.0
  %1220 = vadd.xlane.f32.xlu0 %v1219
  %v1221 = vpop.xlane.xlu0 %1220
  %v1222 = vsel %vm677, %v1052, 0.0
  %1223 = vadd.xlane.f32.xlu0 %v1222
  %v1224 = vpop.xlane.xlu0 %1223
  %v1225 = vsel %vm677, %v1053, 0.0
  %1226 = vadd.xlane.f32.xlu0 %v1225
  %v1227 = vpop.xlane.xlu0 %1226
  %v1228 = vsel %vm677, %v1054, 0.0
  %1229 = vadd.xlane.f32.xlu0 %v1228
  %v1230 = vpop.xlane.xlu0 %1229
  %v1231 = vsel %vm677, %v1055, 0.0
  %1232 = vadd.xlane.f32.xlu0 %v1231
  %v1233 = vpop.xlane.xlu0 %1232
  %v1234 = vsel %vm677, %v1056, 0.0
  %1235 = vadd.xlane.f32.xlu0 %v1234
  %v1236 = vpop.xlane.xlu0 %1235
  %v1237 = vsel %vm677, %v1057, 0.0
  %1238 = vadd.xlane.f32.xlu0 %v1237
  %v1239 = vpop.xlane.xlu0 %1238
  %v1240 = vsel %vm677, %v1058, 0.0
  %1241 = vadd.xlane.f32.xlu0 %v1240
  %v1242 = vpop.xlane.xlu0 %1241
  %v1243 = vsel %vm677, %v1059, 0.0
  %1244 = vadd.xlane.f32.xlu0 %v1243
  %v1245 = vpop.xlane.xlu0 %1244
  %v1246 = vsel %vm677, %v1060, 0.0
  %1247 = vadd.xlane.f32.xlu0 %v1246
  %v1248 = vpop.xlane.xlu0 %1247
  %v1249 = vsel %vm677, %v1061, 0.0
  %1250 = vadd.xlane.f32.xlu0 %v1249
  %v1251 = vpop.xlane.xlu0 %1250
  %v1252 = vsel %vm677, %v1062, 0.0
  %1253 = vadd.xlane.f32.xlu0 %v1252
  %v1254 = vpop.xlane.xlu0 %1253
  %v1255 = vmul.f32 %v1065, %v870
  %v1256 = vmul.f32 %v1068, %v870
  %v1257 = vmul.f32 %v1071, %v870
  %v1258 = vmul.f32 %v1074, %v870
  %v1259 = vmul.f32 %v1077, %v870
  %v1260 = vmul.f32 %v1080, %v870
  %v1261 = vmul.f32 %v1083, %v870
  %v1262 = vmul.f32 %v1086, %v870
  %v1263 = vmul.f32 %v1089, %v870
  %v1264 = vmul.f32 %v1092, %v870
  %v1265 = vmul.f32 %v1095, %v870
  %v1266 = vmul.f32 %v1098, %v870
  %v1267 = vmul.f32 %v1101, %v870
  %v1268 = vmul.f32 %v1104, %v870
  %v1269 = vmul.f32 %v1107, %v870
  %v1270 = vmul.f32 %v1110, %v870
  %v1271 = vmul.f32 %v1113, %v870
  %v1272 = vmul.f32 %v1116, %v870
  %v1273 = vmul.f32 %v1119, %v870
  %v1274 = vmul.f32 %v1122, %v870
  %v1275 = vmul.f32 %v1125, %v870
  %v1276 = vmul.f32 %v1128, %v870
  %v1277 = vmul.f32 %v1131, %v870
  %v1278 = vmul.f32 %v1134, %v870
  %v1279 = vmul.f32 %v1137, %v870
  %v1280 = vmul.f32 %v1140, %v870
  %v1281 = vmul.f32 %v1143, %v870
  %v1282 = vmul.f32 %v1146, %v870
  %v1283 = vmul.f32 %v1149, %v870
  %v1284 = vmul.f32 %v1152, %v870
  %v1285 = vmul.f32 %v1155, %v870
  %v1286 = vmul.f32 %v1158, %v870
  %v1287 = vmul.f32 %v1161, %v870
  %v1288 = vmul.f32 %v1164, %v870
  %v1289 = vmul.f32 %v1167, %v870
  %v1290 = vmul.f32 %v1170, %v870
  %v1291 = vmul.f32 %v1173, %v870
  %v1292 = vmul.f32 %v1176, %v870
  %v1293 = vmul.f32 %v1179, %v870
  %v1294 = vmul.f32 %v1182, %v870
  %v1295 = vmul.f32 %v1185, %v870
  %v1296 = vmul.f32 %v1188, %v870
  %v1297 = vmul.f32 %v1191, %v870
  %v1298 = vmul.f32 %v1194, %v870
  %v1299 = vmul.f32 %v1197, %v870
  %v1300 = vmul.f32 %v1200, %v870
  %v1301 = vmul.f32 %v1203, %v870
  %v1302 = vmul.f32 %v1206, %v870
  %v1303 = vmul.f32 %v1209, %v870
  %v1304 = vmul.f32 %v1212, %v870
  %v1305 = vmul.f32 %v1215, %v870
  %v1306 = vmul.f32 %v1218, %v870
  %v1307 = vmul.f32 %v1221, %v870
  %v1308 = vmul.f32 %v1224, %v870
  %v1309 = vmul.f32 %v1227, %v870
  %v1310 = vmul.f32 %v1230, %v870
  %v1311 = vmul.f32 %v1233, %v870
  %v1312 = vmul.f32 %v1236, %v870
  %v1313 = vmul.f32 %v1239, %v870
  %v1314 = vmul.f32 %v1242, %v870
  %v1315 = vmul.f32 %v1245, %v870
  %v1316 = vmul.f32 %v1248, %v870
  %v1317 = vmul.f32 %v1251, %v870
  %v1318 = vmul.f32 %v1254, %v870
  %v1319 = vadd.f32 %v1255, 1e-06
  %v1320 = vadd.f32 %v1256, 1e-06
  %v1321 = vadd.f32 %v1257, 1e-06
  %v1322 = vadd.f32 %v1258, 1e-06
  %v1323 = vadd.f32 %v1259, 1e-06
  %v1324 = vadd.f32 %v1260, 1e-06
  %v1325 = vadd.f32 %v1261, 1e-06
  %v1326 = vadd.f32 %v1262, 1e-06
  %v1327 = vadd.f32 %v1263, 1e-06
  %v1328 = vadd.f32 %v1264, 1e-06
  %v1329 = vadd.f32 %v1265, 1e-06
  %v1330 = vadd.f32 %v1266, 1e-06
  %v1331 = vadd.f32 %v1267, 1e-06
  %v1332 = vadd.f32 %v1268, 1e-06
  %v1333 = vadd.f32 %v1269, 1e-06
  %v1334 = vadd.f32 %v1270, 1e-06
  %v1335 = vadd.f32 %v1271, 1e-06
  %v1336 = vadd.f32 %v1272, 1e-06
  %v1337 = vadd.f32 %v1273, 1e-06
  %v1338 = vadd.f32 %v1274, 1e-06
  %v1339 = vadd.f32 %v1275, 1e-06
  %v1340 = vadd.f32 %v1276, 1e-06
  %v1341 = vadd.f32 %v1277, 1e-06
  %v1342 = vadd.f32 %v1278, 1e-06
  %v1343 = vadd.f32 %v1279, 1e-06
  %v1344 = vadd.f32 %v1280, 1e-06
  %v1345 = vadd.f32 %v1281, 1e-06
  %v1346 = vadd.f32 %v1282, 1e-06
  %v1347 = vadd.f32 %v1283, 1e-06
  %v1348 = vadd.f32 %v1284, 1e-06
  %v1349 = vadd.f32 %v1285, 1e-06
  %v1350 = vadd.f32 %v1286, 1e-06
  %v1351 = vadd.f32 %v1287, 1e-06
  %v1352 = vadd.f32 %v1288, 1e-06
  %v1353 = vadd.f32 %v1289, 1e-06
  %v1354 = vadd.f32 %v1290, 1e-06
  %v1355 = vadd.f32 %v1291, 1e-06
  %v1356 = vadd.f32 %v1292, 1e-06
  %v1357 = vadd.f32 %v1293, 1e-06
  %v1358 = vadd.f32 %v1294, 1e-06
  %v1359 = vadd.f32 %v1295, 1e-06
  %v1360 = vadd.f32 %v1296, 1e-06
  %v1361 = vadd.f32 %v1297, 1e-06
  %v1362 = vadd.f32 %v1298, 1e-06
  %v1363 = vadd.f32 %v1299, 1e-06
  %v1364 = vadd.f32 %v1300, 1e-06
  %v1365 = vadd.f32 %v1301, 1e-06
  %v1366 = vadd.f32 %v1302, 1e-06
  %v1367 = vadd.f32 %v1303, 1e-06
  %v1368 = vadd.f32 %v1304, 1e-06
  %v1369 = vadd.f32 %v1305, 1e-06
  %v1370 = vadd.f32 %v1306, 1e-06
  %v1371 = vadd.f32 %v1307, 1e-06
  %v1372 = vadd.f32 %v1308, 1e-06
  %v1373 = vadd.f32 %v1309, 1e-06
  %v1374 = vadd.f32 %v1310, 1e-06
  %v1375 = vadd.f32 %v1311, 1e-06
  %v1376 = vadd.f32 %v1312, 1e-06
  %v1377 = vadd.f32 %v1313, 1e-06
  %v1378 = vadd.f32 %v1314, 1e-06
  %v1379 = vadd.f32 %v1315, 1e-06
  %v1380 = vadd.f32 %v1316, 1e-06
  %v1381 = vadd.f32 %v1317, 1e-06
  %v1382 = vadd.f32 %v1318, 1e-06
  %v1383 = vrsqrt.pop %v1319
  %v1384 = vrsqrt.pop %v1320
  %v1385 = vrsqrt.pop %v1321
  %v1386 = vrsqrt.pop %v1322
  %v1387 = vrsqrt.pop %v1323
  %v1388 = vrsqrt.pop %v1324
  %v1389 = vrsqrt.pop %v1325
  %v1390 = vrsqrt.pop %v1326
  %v1391 = vrsqrt.pop %v1327
  %v1392 = vrsqrt.pop %v1328
  %v1393 = vrsqrt.pop %v1329
  %v1394 = vrsqrt.pop %v1330
  %v1395 = vrsqrt.pop %v1331
  %v1396 = vrsqrt.pop %v1332
  %v1397 = vrsqrt.pop %v1333
  %v1398 = vrsqrt.pop %v1334
  %v1399 = vrsqrt.pop %v1335
  %v1400 = vrsqrt.pop %v1336
  %v1401 = vrsqrt.pop %v1337
  %v1402 = vrsqrt.pop %v1338
  %v1403 = vrsqrt.pop %v1339
  %v1404 = vrsqrt.pop %v1340
  %v1405 = vrsqrt.pop %v1341
  %v1406 = vrsqrt.pop %v1342
  %v1407 = vrsqrt.pop %v1343
  %v1408 = vrsqrt.pop %v1344
  %v1409 = vrsqrt.pop %v1345
  %v1410 = vrsqrt.pop %v1346
  %v1411 = vrsqrt.pop %v1347
  %v1412 = vrsqrt.pop %v1348
  %v1413 = vrsqrt.pop %v1349
  %v1414 = vrsqrt.pop %v1350
  %v1415 = vrsqrt.pop %v1351
  %v1416 = vrsqrt.pop %v1352
  %v1417 = vrsqrt.pop %v1353
  %v1418 = vrsqrt.pop %v1354
  %v1419 = vrsqrt.pop %v1355
  %v1420 = vrsqrt.pop %v1356
  %v1421 = vrsqrt.pop %v1357
  %v1422 = vrsqrt.pop %v1358
  %v1423 = vrsqrt.pop %v1359
  %v1424 = vrsqrt.pop %v1360
  %v1425 = vrsqrt.pop %v1361
  %v1426 = vrsqrt.pop %v1362
  %v1427 = vrsqrt.pop %v1363
  %v1428 = vrsqrt.pop %v1364
  %v1429 = vrsqrt.pop %v1365
  %v1430 = vrsqrt.pop %v1366
  %v1431 = vrsqrt.pop %v1367
  %v1432 = vrsqrt.pop %v1368
  %v1433 = vrsqrt.pop %v1369
  %v1434 = vrsqrt.pop %v1370
  %v1435 = vrsqrt.pop %v1371
  %v1436 = vrsqrt.pop %v1372
  %v1437 = vrsqrt.pop %v1373
  %v1438 = vrsqrt.pop %v1374
  %v1439 = vrsqrt.pop %v1375
  %v1440 = vrsqrt.pop %v1376
  %v1441 = vrsqrt.pop %v1377
  %v1442 = vrsqrt.pop %v1378
  %v1443 = vrsqrt.pop %v1379
  %v1444 = vrsqrt.pop %v1380
  %v1445 = vrsqrt.pop %v1381
  %v1446 = vrsqrt.pop %v1382
  %v1447 = vmul.f32 %v935, %v1383
  %v1448 = vmul.f32 %v936, %v1384
  %v1449 = vmul.f32 %v937, %v1385
  %v1450 = vmul.f32 %v938, %v1386
  %v1451 = vmul.f32 %v939, %v1387
  %v1452 = vmul.f32 %v940, %v1388
  %v1453 = vmul.f32 %v941, %v1389
  %v1454 = vmul.f32 %v942, %v1390
  %v1455 = vmul.f32 %v943, %v1391
  %v1456 = vmul.f32 %v944, %v1392
  %v1457 = vmul.f32 %v945, %v1393
  %v1458 = vmul.f32 %v946, %v1394
  %v1459 = vmul.f32 %v947, %v1395
  %v1460 = vmul.f32 %v948, %v1396
  %v1461 = vmul.f32 %v949, %v1397
  %v1462 = vmul.f32 %v950, %v1398
  %v1463 = vmul.f32 %v951, %v1399
  %v1464 = vmul.f32 %v952, %v1400
  %v1465 = vmul.f32 %v953, %v1401
  %v1466 = vmul.f32 %v954, %v1402
  %v1467 = vmul.f32 %v955, %v1403
  %v1468 = vmul.f32 %v956, %v1404
  %v1469 = vmul.f32 %v957, %v1405
  %v1470 = vmul.f32 %v958, %v1406
  %v1471 = vmul.f32 %v959, %v1407
  %v1472 = vmul.f32 %v960, %v1408
  %v1473 = vmul.f32 %v961, %v1409
  %v1474 = vmul.f32 %v962, %v1410
  %v1475 = vmul.f32 %v963, %v1411
  %v1476 = vmul.f32 %v964, %v1412
  %v1477 = vmul.f32 %v965, %v1413
  %v1478 = vmul.f32 %v966, %v1414
  %v1479 = vmul.f32 %v967, %v1415
  %v1480 = vmul.f32 %v968, %v1416
  %v1481 = vmul.f32 %v969, %v1417
  %v1482 = vmul.f32 %v970, %v1418
  %v1483 = vmul.f32 %v971, %v1419
  %v1484 = vmul.f32 %v972, %v1420
  %v1485 = vmul.f32 %v973, %v1421
  %v1486 = vmul.f32 %v974, %v1422
  %v1487 = vmul.f32 %v975, %v1423
  %v1488 = vmul.f32 %v976, %v1424
  %v1489 = vmul.f32 %v977, %v1425
  %v1490 = vmul.f32 %v978, %v1426
  %v1491 = vmul.f32 %v979, %v1427
  %v1492 = vmul.f32 %v980, %v1428
  %v1493 = vmul.f32 %v981, %v1429
  %v1494 = vmul.f32 %v982, %v1430
  %v1495 = vmul.f32 %v983, %v1431
  %v1496 = vmul.f32 %v984, %v1432
  %v1497 = vmul.f32 %v985, %v1433
  %v1498 = vmul.f32 %v986, %v1434
  %v1499 = vmul.f32 %v987, %v1435
  %v1500 = vmul.f32 %v988, %v1436
  %v1501 = vmul.f32 %v989, %v1437
  %v1502 = vmul.f32 %v990, %v1438
  %v1503 = vmul.f32 %v991, %v1439
  %v1504 = vmul.f32 %v992, %v1440
  %v1505 = vmul.f32 %v993, %v1441
  %v1506 = vmul.f32 %v994, %v1442
  %v1507 = vmul.f32 %v995, %v1443
  %v1508 = vmul.f32 %v996, %v1444
  %v1509 = vmul.f32 %v997, %v1445
  %v1510 = vmul.f32 %v998, %v1446
  %v1512 = vlaneseq
  %v1513 = vshrl.u32 %v1512, 7
  %v1514 = vsub.s32 0, %v1513
  %v1515 = vrot.slane %v675, %v1514
  %v1517 = vmul.f32 %v1447, %v1515
  %v1518 = vmul.f32 %v1448, %v1515
  %v1519 = vmul.f32 %v1449, %v1515
  %v1520 = vmul.f32 %v1450, %v1515
  %v1521 = vmul.f32 %v1451, %v1515
  %v1522 = vmul.f32 %v1452, %v1515
  %v1523 = vmul.f32 %v1453, %v1515
  %v1524 = vmul.f32 %v1454, %v1515
  %v1525 = vmul.f32 %v1455, %v1515
  %v1526 = vmul.f32 %v1456, %v1515
  %v1527 = vmul.f32 %v1457, %v1515
  %v1528 = vmul.f32 %v1458, %v1515
  %v1529 = vmul.f32 %v1459, %v1515
  %v1530 = vmul.f32 %v1460, %v1515
  %v1531 = vmul.f32 %v1461, %v1515
  %v1532 = vmul.f32 %v1462, %v1515
  %v1533 = vmul.f32 %v1463, %v1515
  %v1534 = vmul.f32 %v1464, %v1515
  %v1535 = vmul.f32 %v1465, %v1515
  %v1536 = vmul.f32 %v1466, %v1515
  %v1537 = vmul.f32 %v1467, %v1515
  %v1538 = vmul.f32 %v1468, %v1515
  %v1539 = vmul.f32 %v1469, %v1515
  %v1540 = vmul.f32 %v1470, %v1515
  %v1541 = vmul.f32 %v1471, %v1515
  %v1542 = vmul.f32 %v1472, %v1515
  %v1543 = vmul.f32 %v1473, %v1515
  %v1544 = vmul.f32 %v1474, %v1515
  %v1545 = vmul.f32 %v1475, %v1515
  %v1546 = vmul.f32 %v1476, %v1515
  %v1547 = vmul.f32 %v1477, %v1515
  %v1548 = vmul.f32 %v1478, %v1515
  %v1549 = vmul.f32 %v1479, %v1515
  %v1550 = vmul.f32 %v1480, %v1515
  %v1551 = vmul.f32 %v1481, %v1515
  %v1552 = vmul.f32 %v1482, %v1515
  %v1553 = vmul.f32 %v1483, %v1515
  %v1554 = vmul.f32 %v1484, %v1515
  %v1555 = vmul.f32 %v1485, %v1515
  %v1556 = vmul.f32 %v1486, %v1515
  %v1557 = vmul.f32 %v1487, %v1515
  %v1558 = vmul.f32 %v1488, %v1515
  %v1559 = vmul.f32 %v1489, %v1515
  %v1560 = vmul.f32 %v1490, %v1515
  %v1561 = vmul.f32 %v1491, %v1515
  %v1562 = vmul.f32 %v1492, %v1515
  %v1563 = vmul.f32 %v1493, %v1515
  %v1564 = vmul.f32 %v1494, %v1515
  %v1565 = vmul.f32 %v1495, %v1515
  %v1566 = vmul.f32 %v1496, %v1515
  %v1567 = vmul.f32 %v1497, %v1515
  %v1568 = vmul.f32 %v1498, %v1515
  %v1569 = vmul.f32 %v1499, %v1515
  %v1570 = vmul.f32 %v1500, %v1515
  %v1571 = vmul.f32 %v1501, %v1515
  %v1572 = vmul.f32 %v1502, %v1515
  %v1573 = vmul.f32 %v1503, %v1515
  %v1574 = vmul.f32 %v1504, %v1515
  %v1575 = vmul.f32 %v1505, %v1515
  %v1576 = vmul.f32 %v1506, %v1515
  %v1577 = vmul.f32 %v1507, %v1515
  %v1578 = vmul.f32 %v1508, %v1515
  %v1579 = vmul.f32 %v1509, %v1515
  %v1580 = vmul.f32 %v1510, %v1515
  %v1582 = vlaneseq
  %v1583 = vshrl.u32 %v1582, 7
  %v1584 = vsub.s32 0, %v1583
  %v1585 = vrot.slane %v676, %v1584
  %v1587 = vadd.f32 %v1517, %v1585
  %v1588 = vadd.f32 %v1518, %v1585
  %v1589 = vadd.f32 %v1519, %v1585
  %v1590 = vadd.f32 %v1520, %v1585
  %v1591 = vadd.f32 %v1521, %v1585
  %v1592 = vadd.f32 %v1522, %v1585
  %v1593 = vadd.f32 %v1523, %v1585
  %v1594 = vadd.f32 %v1524, %v1585
  %v1595 = vadd.f32 %v1525, %v1585
  %v1596 = vadd.f32 %v1526, %v1585
  %v1597 = vadd.f32 %v1527, %v1585
  %v1598 = vadd.f32 %v1528, %v1585
  %v1599 = vadd.f32 %v1529, %v1585
  %v1600 = vadd.f32 %v1530, %v1585
  %v1601 = vadd.f32 %v1531, %v1585
  %v1602 = vadd.f32 %v1532, %v1585
  %v1603 = vadd.f32 %v1533, %v1585
  %v1604 = vadd.f32 %v1534, %v1585
  %v1605 = vadd.f32 %v1535, %v1585
  %v1606 = vadd.f32 %v1536, %v1585
  %v1607 = vadd.f32 %v1537, %v1585
  %v1608 = vadd.f32 %v1538, %v1585
  %v1609 = vadd.f32 %v1539, %v1585
  %v1610 = vadd.f32 %v1540, %v1585
  %v1611 = vadd.f32 %v1541, %v1585
  %v1612 = vadd.f32 %v1542, %v1585
  %v1613 = vadd.f32 %v1543, %v1585
  %v1614 = vadd.f32 %v1544, %v1585
  %v1615 = vadd.f32 %v1545, %v1585
  %v1616 = vadd.f32 %v1546, %v1585
  %v1617 = vadd.f32 %v1547, %v1585
  %v1618 = vadd.f32 %v1548, %v1585
  %v1619 = vadd.f32 %v1549, %v1585
  %v1620 = vadd.f32 %v1550, %v1585
  %v1621 = vadd.f32 %v1551, %v1585
  %v1622 = vadd.f32 %v1552, %v1585
  %v1623 = vadd.f32 %v1553, %v1585
  %v1624 = vadd.f32 %v1554, %v1585
  %v1625 = vadd.f32 %v1555, %v1585
  %v1626 = vadd.f32 %v1556, %v1585
  %v1627 = vadd.f32 %v1557, %v1585
  %v1628 = vadd.f32 %v1558, %v1585
  %v1629 = vadd.f32 %v1559, %v1585
  %v1630 = vadd.f32 %v1560, %v1585
  %v1631 = vadd.f32 %v1561, %v1585
  %v1632 = vadd.f32 %v1562, %v1585
  %v1633 = vadd.f32 %v1563, %v1585
  %v1634 = vadd.f32 %v1564, %v1585
  %v1635 = vadd.f32 %v1565, %v1585
  %v1636 = vadd.f32 %v1566, %v1585
  %v1637 = vadd.f32 %v1567, %v1585
  %v1638 = vadd.f32 %v1568, %v1585
  %v1639 = vadd.f32 %v1569, %v1585
  %v1640 = vadd.f32 %v1570, %v1585
  %v1641 = vadd.f32 %v1571, %v1585
  %v1642 = vadd.f32 %v1572, %v1585
  %v1643 = vadd.f32 %v1573, %v1585
  %v1644 = vadd.f32 %v1574, %v1585
  %v1645 = vadd.f32 %v1575, %v1585
  %v1646 = vadd.f32 %v1576, %v1585
  %v1647 = vadd.f32 %v1577, %v1585
  %v1648 = vadd.f32 %v1578, %v1585
  %v1649 = vadd.f32 %v1579, %v1585
  %v1650 = vadd.f32 %v1580, %v1585
  %1651 = vst.msk [vmem:[%s5] sm:$0xff] %vm677, %v1587
  %1652 = vst.msk [vmem:[%s5 + $0x8] sm:$0xff] %vm677, %v1588
  %1653 = vst.msk [vmem:[%s5 + $0x10] sm:$0xff] %vm677, %v1589
  %1654 = vst.msk [vmem:[%s5 + $0x18] sm:$0xff] %vm677, %v1590
  %1655 = vst.msk [vmem:[%s5 + $0x20] sm:$0xff] %vm677, %v1591
  %1656 = vst.msk [vmem:[%s5 + $0x28] sm:$0xff] %vm677, %v1592
  %1657 = vst.msk [vmem:[%s5 + $0x30] sm:$0xff] %vm677, %v1593
  %1658 = vst.msk [vmem:[%s5 + $0x38] sm:$0xff] %vm677, %v1594
  %1659 = vst.msk [vmem:[%s5 + $0x40] sm:$0xff] %vm677, %v1595
  %1660 = vst.msk [vmem:[%s5 + $0x48] sm:$0xff] %vm677, %v1596
  %1661 = vst.msk [vmem:[%s5 + $0x50] sm:$0xff] %vm677, %v1597
  %1662 = vst.msk [vmem:[%s5 + $0x58] sm:$0xff] %vm677, %v1598
  %1663 = vst.msk [vmem:[%s5 + $0x60] sm:$0xff] %vm677, %v1599
  %1664 = vst.msk [vmem:[%s5 + $0x68] sm:$0xff] %vm677, %v1600
  %1665 = vst.msk [vmem:[%s5 + $0x70] sm:$0xff] %vm677, %v1601
  %1666 = vst.msk [vmem:[%s5 + $0x78] sm:$0xff] %vm677, %v1602
  %1667 = vst.msk [vmem:[%s5 + $0x80] sm:$0xff] %vm677, %v1603
  %1668 = vst.msk [vmem:[%s5 + $0x88] sm:$0xff] %vm677, %v1604
  %1669 = vst.msk [vmem:[%s5 + $0x90] sm:$0xff] %vm677, %v1605
  %1670 = vst.msk [vmem:[%s5 + $0x98] sm:$0xff] %vm677, %v1606
  %1671 = vst.msk [vmem:[%s5 + $0xa0] sm:$0xff] %vm677, %v1607
  %1672 = vst.msk [vmem:[%s5 + $0xa8] sm:$0xff] %vm677, %v1608
  %1673 = vst.msk [vmem:[%s5 + $0xb0] sm:$0xff] %vm677, %v1609
  %1674 = vst.msk [vmem:[%s5 + $0xb8] sm:$0xff] %vm677, %v1610
  %1675 = vst.msk [vmem:[%s5 + $0xc0] sm:$0xff] %vm677, %v1611
  %1676 = vst.msk [vmem:[%s5 + $0xc8] sm:$0xff] %vm677, %v1612
  %1677 = vst.msk [vmem:[%s5 + $0xd0] sm:$0xff] %vm677, %v1613
  %1678 = vst.msk [vmem:[%s5 + $0xd8] sm:$0xff] %vm677, %v1614
  %1679 = vst.msk [vmem:[%s5 + $0xe0] sm:$0xff] %vm677, %v1615
  %1680 = vst.msk [vmem:[%s5 + $0xe8] sm:$0xff] %vm677, %v1616
  %1681 = vst.msk [vmem:[%s5 + $0xf0] sm:$0xff] %vm677, %v1617
  %1682 = vst.msk [vmem:[%s5 + $0xf8] sm:$0xff] %vm677, %v1618
  %1683 = vst.msk [vmem:[%s5 + $0x100] sm:$0xff] %vm677, %v1619
  %1684 = vst.msk [vmem:[%s5 + $0x108] sm:$0xff] %vm677, %v1620
  %1685 = vst.msk [vmem:[%s5 + $0x110] sm:$0xff] %vm677, %v1621
  %1686 = vst.msk [vmem:[%s5 + $0x118] sm:$0xff] %vm677, %v1622
  %1687 = vst.msk [vmem:[%s5 + $0x120] sm:$0xff] %vm677, %v1623
  %1688 = vst.msk [vmem:[%s5 + $0x128] sm:$0xff] %vm677, %v1624
  %1689 = vst.msk [vmem:[%s5 + $0x130] sm:$0xff] %vm677, %v1625
  %1690 = vst.msk [vmem:[%s5 + $0x138] sm:$0xff] %vm677, %v1626
  %1691 = vst.msk [vmem:[%s5 + $0x140] sm:$0xff] %vm677, %v1627
  %1692 = vst.msk [vmem:[%s5 + $0x148] sm:$0xff] %vm677, %v1628
  %1693 = vst.msk [vmem:[%s5 + $0x150] sm:$0xff] %vm677, %v1629
  %1694 = vst.msk [vmem:[%s5 + $0x158] sm:$0xff] %vm677, %v1630
  %1695 = vst.msk [vmem:[%s5 + $0x160] sm:$0xff] %vm677, %v1631
  %1696 = vst.msk [vmem:[%s5 + $0x168] sm:$0xff] %vm677, %v1632
  %1697 = vst.msk [vmem:[%s5 + $0x170] sm:$0xff] %vm677, %v1633
  %1698 = vst.msk [vmem:[%s5 + $0x178] sm:$0xff] %vm677, %v1634
  %1699 = vst.msk [vmem:[%s5 + $0x180] sm:$0xff] %vm677, %v1635
  %1700 = vst.msk [vmem:[%s5 + $0x188] sm:$0xff] %vm677, %v1636
  %1701 = vst.msk [vmem:[%s5 + $0x190] sm:$0xff] %vm677, %v1637
  %1702 = vst.msk [vmem:[%s5 + $0x198] sm:$0xff] %vm677, %v1638
  %1703 = vst.msk [vmem:[%s5 + $0x1a0] sm:$0xff] %vm677, %v1639
  %1704 = vst.msk [vmem:[%s5 + $0x1a8] sm:$0xff] %vm677, %v1640
  %1705 = vst.msk [vmem:[%s5 + $0x1b0] sm:$0xff] %vm677, %v1641
  %1706 = vst.msk [vmem:[%s5 + $0x1b8] sm:$0xff] %vm677, %v1642
  %1707 = vst.msk [vmem:[%s5 + $0x1c0] sm:$0xff] %vm677, %v1643
  %1708 = vst.msk [vmem:[%s5 + $0x1c8] sm:$0xff] %vm677, %v1644
  %1709 = vst.msk [vmem:[%s5 + $0x1d0] sm:$0xff] %vm677, %v1645
  %1710 = vst.msk [vmem:[%s5 + $0x1d8] sm:$0xff] %vm677, %v1646
  %1711 = vst.msk [vmem:[%s5 + $0x1e0] sm:$0xff] %vm677, %v1647
  %1712 = vst.msk [vmem:[%s5 + $0x1e8] sm:$0xff] %vm677, %v1648
  %1713 = vst.msk [vmem:[%s5 + $0x1f0] sm:$0xff] %vm677, %v1649
  %1714 = vst.msk [vmem:[%s5 + $0x1f8] sm:$0xff] %vm677, %v1650
  // Predicated region
  $region22: #{tpu_custom_call.1} parent=0 // pred_check
    _
  $region23: #{tpu_custom_call.1} parent=0 // pred_check_branch
    %1716 = sbr.rel (0) target = $region25
  $region24: #{tpu_custom_call.1} parent=0 // pred_region
    _
  $region25: #{tpu_custom_call.1} parent=0 // pred_fallthru
    _
  // Predicated region
  $region26: #{tpu_custom_call.1} parent=0 // pred_check
    _
  $region27: #{tpu_custom_call.1} parent=0 // pred_check_branch
    %1718 = sbr.rel (0) target = $region29
  $region28: #{tpu_custom_call.1} parent=0 // pred_region
    _
  $region29: #{tpu_custom_call.1} parent=0 // pred_fallthru
    _

</llo_original>
